<compile_context>
chip_gen: v7x
topology: tpu7x:2x2x1
jax: 0.10.0
libtpu: 0.0.40
codegen_flags: <defaults>
</compile_context>

<pallas_src>
import functools
import math

import jax
import jax.numpy as jnp
from jax.experimental import pallas as pl
from jax.experimental.pallas import tpu as pltpu


# ---------------------------------------------------------------------------
# Host-side helpers.
# ---------------------------------------------------------------------------
def rotary_tables(seq_len, head_dim):
    """RotaryEmbedding.forward: pos = cat(freqs, freqs, dim=-1); cos/sin."""
    inv_freq = 1.0 / (10000.0 ** (jnp.arange(0, head_dim, 2, dtype=jnp.float32)
                                  / head_dim))
    t = jnp.arange(seq_len, dtype=jnp.float32)
    freqs = jnp.einsum('i,j->ij', t, inv_freq)            # (T, Dh/2)
    pos = jnp.concatenate([freqs, freqs], axis=-1)        # (T, Dh)
    return jnp.cos(pos), jnp.sin(pos)


def _rope_half_tables(seq_len, head_dim):
    """(T, Dh/2) cos/sin tables (same table serves both head halves)."""
    inv_freq = 1.0 / (10000.0 ** (jnp.arange(0, head_dim, 2, dtype=jnp.float32)
                                  / head_dim))
    t = jnp.arange(seq_len, dtype=jnp.float32)
    freqs = jnp.einsum('i,j->ij', t, inv_freq)            # (T, Dh/2)
    return jnp.cos(freqs), jnp.sin(freqs)


def _pick_tile(n, cap, mult):
    """Largest divisor of n <= cap that is a multiple of mult (with fallbacks)."""
    for m in (mult, 8, 1):
        for t in range(min(n, cap), 0, -1):
            if n % t == 0 and t % m == 0:
                return t
    return n


def _vmem_limit_bytes():
    """Raise the scoped-VMEM limit above the 16/32 MiB defaults, per generation."""
    try:
        cap = int(pltpu.get_tpu_info().vmem_capacity_bytes)
    except Exception:
        cap = 128 * 1024 * 1024
    if cap <= 0:
        cap = 128 * 1024 * 1024
    # ~3/4 of physical: 96 MiB on v5e/v6e (128 MiB), 48 MiB on v7x (64 MiB).
    return int(min(max(cap * 3 // 4, 32 * 1024 * 1024), 100 * 1024 * 1024))


def _normalize_mask(mask, B, T):
    """Additive mask, pre head-broadcast (mirrors the module's mask handling)."""
    if mask is None:
        return None
    m = jnp.asarray(mask)
    if not jnp.issubdtype(m.dtype, jnp.floating):
        # Module semantics are purely additive (scores + mask); non-float masks
        # are added as 0/1 just like torch's type promotion would.
        m = m.astype(jnp.float32)
    if m.ndim == 2:          # (B, T) key mask -> broadcast over queries/heads
        m = m[:, None, :]    # (B, 1, T)
    elif m.ndim == 4:        # already (B, 1, T, T)
        m = m[:, 0]
    if m.ndim != 3:
        raise ValueError(f"unsupported mask rank for shape {mask.shape}")
    return m


# ---------------------------------------------------------------------------
# Stage 1: fused QKV projection + RoPE, head-major outputs.
# ---------------------------------------------------------------------------
def _qkv_rope_kernel(x_ref, wq_ref, wk_ref, wv_ref, bq_ref, bk_ref, bv_ref,
                     cos_ref, sin_ref, q_ref, k_ref, v_ref,
                     *, n_heads, head_dim):
    """Grid = (B, T // tq).

    x_ref      : (1, tq, C)  activation dtype (MXU operand)
    w*_ref     : (C, C)      activation dtype (W_q pre-scaled by 1/sqrt(Dh))
    b*_ref     : (1, C)      f32
    cos/sin    : (tq, Dh/2)  f32
    q/k/v out  : (1, H, tq, Dh) activation dtype
    """
    half = head_dim // 2
    x = x_ref[0]                                           # (tq, C)
    cos = cos_ref[...]                                     # (tq, half) f32
    sin = sin_ref[...]
    odt = q_ref.dtype

    def project_and_store(w_ref, b_ref, out_ref, apply_rope):
        # One C-wide dot at a time keeps the live f32 set to ~(tq, C).
        lin = jnp.dot(x, w_ref[...], preferred_element_type=jnp.float32)
        lin = lin + b_ref[...]                             # (tq, C) f32
        for h in range(n_heads):                           # static, small loop
            lo = h * head_dim
            if apply_rope:
                # rotate_half computed on the half slices directly: no roll,
                # no lane concatenate; each element is cast exactly once.
                t1 = lin[:, lo:lo + half]                  # (tq, half)
                t2 = lin[:, lo + half:lo + head_dim]
                out_ref[0, h, :, 0:half] = (t1 * cos - t2 * sin).astype(odt)
                out_ref[0, h, :, half:head_dim] = (t2 * cos + t1 * sin).astype(odt)
            else:
                out_ref[0, h] = lin[:, lo:lo + head_dim].astype(odt)

    project_and_store(wq_ref, bq_ref, q_ref, True)
    project_and_store(wk_ref, bk_ref, k_ref, True)
    project_and_store(wv_ref, bv_ref, v_ref, False)


# ---------------------------------------------------------------------------
# Stage 2: flash attention (online softmax), pre-projection output.
# ---------------------------------------------------------------------------
def _flash_attn_kernel(*refs, n_heads, head_dim, tq, tk, causal, has_mask,
                       approx_recip):
    """Grid = (B, T // tq, T // tk); kv axis (last) is the reduction axis."""
    if has_mask:
        q_ref, k_ref, v_ref, mask_ref, o_ref, m_sc, l_sc, acc_sc = refs
    else:
        q_ref, k_ref, v_ref, o_ref, m_sc, l_sc, acc_sc = refs
        mask_ref = None

    qi = pl.program_id(1)
    kv = pl.program_id(2)

    @pl.when(kv == 0)
    def _():
        m_sc[...] = jnp.full(m_sc.shape, -jnp.inf, dtype=jnp.float32)
        l_sc[...] = jnp.zeros(l_sc.shape, dtype=jnp.float32)
        acc_sc[...] = jnp.zeros(acc_sc.shape, dtype=jnp.float32)

    def step():
        q = q_ref[0]                                       # (H, tq, Dh), scale folded in
        k = k_ref[0]                                       # (H, tk, Dh)
        v = v_ref[0]                                       # (H, tk, Dh)
        # Batched contraction over the head dim -- no explicit k transpose.
        s = jnp.einsum('hqd,hkd->hqk', q, k,
                       preferred_element_type=jnp.float32)  # (H, tq, tk)
        if causal:
            # In-kernel causal mask: no (T, T) mask table is ever DMA'd.
            row = qi * tq + jax.lax.broadcasted_iota(jnp.int32, (tq, tk), 0)
            col = kv * tk + jax.lax.broadcasted_iota(jnp.int32, (tq, tk), 1)
            s = jnp.where((row >= col)[None], s, -1e30)
        elif mask_ref is not None:
            s = s + mask_ref[0][None].astype(jnp.float32)  # broadcast over heads
        m_prev = m_sc[...]                                 # (H, tq, 1)
        m_new = jnp.maximum(m_prev, jnp.max(s, axis=-1, keepdims=True))
        alpha = jnp.exp(m_prev - m_new)
        p = jnp.exp(s - m_new)                             # (H, tq, tk) f32
        l_sc[...] = alpha * l_sc[...] + jnp.sum(p, axis=-1, keepdims=True)
        acc_sc[...] = alpha * acc_sc[...] + jnp.einsum(
            'hqk,hkd->hqd', p.astype(v.dtype), v,
            preferred_element_type=jnp.float32)
        m_sc[...] = m_new

    if causal:
        # Skip kv tiles that lie entirely above the diagonal (their k/v DMAs
        # are also elided because the index_map clamps to the diagonal tile).
        pl.when(kv * tk < (qi + 1) * tq)(step)
    else:
        step()

    @pl.when(kv == pl.num_programs(2) - 1)
    def _():
        l = l_sc[...]
        if approx_recip:
            inv_l = pl.reciprocal(l, approx=True)          # EUP slot (bf16 path)
        else:
            inv_l = 1.0 / l                                # exact on the fp32 path
        out = acc_sc[...] * inv_l                          # (H, tq, Dh) f32
        odt = o_ref.dtype
        for h in range(n_heads):                           # head "concat" by column stores
            lo = h * head_dim
            o_ref[0, :, lo:lo + head_dim] = out[h].astype(odt)


# ---------------------------------------------------------------------------
# Stage 3: output projection (lane-dense, single K=C contraction).
# ---------------------------------------------------------------------------
def _out_proj_kernel(a_ref, w_ref, b_ref, o_ref):
    """Grid = (B, T // tm). a: (1, tm, C), w: (C, C), b: (1, C) f32."""
    y = jnp.dot(a_ref[0], w_ref[...], preferred_element_type=jnp.float32)
    o_ref[0] = (y + b_ref[...]).astype(o_ref.dtype)


# ---------------------------------------------------------------------------
# Wrapper.
# ---------------------------------------------------------------------------
def hrom_attention(x, params, mask=None, *, n_heads, causal=False,
                   q_block=None, kv_block=None):
    B, T, C = x.shape
    if C % n_heads != 0:
        raise ValueError('dim must be divisible by n_heads')
    head_dim = C // n_heads
    if head_dim % 2 != 0:
        raise ValueError('head_dim must be even for RoPE')
    if causal and mask is not None:
        raise ValueError('pass either causal=True or an explicit mask, not both')

    dtype = x.dtype
    itemsize = jnp.dtype(dtype).itemsize
    is_f32 = (dtype == jnp.float32)
    sub_mult = 8 if is_f32 else 16          # bf16 packs two rows per sublane

    # --- parameters (host-side, free): split QKV, fold 1/sqrt(Dh) into W_q ---
    scale = 1.0 / math.sqrt(head_dim)
    w_qkv = params['w_qkv'].astype(jnp.float32)            # (C, 3C)
    b_qkv = params['b_qkv'].astype(jnp.float32)            # (1, 3C)
    w_q = (w_qkv[:, 0 * C:1 * C] * scale).astype(dtype)
    w_k = w_qkv[:, 1 * C:2 * C].astype(dtype)
    w_v = w_qkv[:, 2 * C:3 * C].astype(dtype)
    b_q = b_qkv[:, 0 * C:1 * C] * scale
    b_k = b_qkv[:, 1 * C:2 * C]
    b_v = b_qkv[:, 2 * C:3 * C]
    w_proj = params['w_proj'].astype(dtype)                # (C, C)
    b_proj = params['b_proj'].astype(jnp.float32)          # (1, C)

    cos_t, sin_t = _rope_half_tables(T, head_dim)          # (T, Dh/2) f32

    tq = q_block if q_block is not None else _pick_tile(T, 512, sub_mult)
    tk = kv_block if kv_block is not None else _pick_tile(
        T, 512, 128 if mask is not None else sub_mult)
    assert T % tq == 0 and T % tk == 0, "tile sizes must divide T"

    vmem_limit = _vmem_limit_bytes()

    # ---- stage 1: fused QKV projection + RoPE (head-major layout) ----------
    qkv_kernel = functools.partial(_qkv_rope_kernel, n_heads=n_heads,
                                   head_dim=head_dim)
    head_shape = jax.ShapeDtypeStruct((B, n_heads, T, head_dim), dtype)
    wspec = pl.BlockSpec((C, C), lambda b, t: (0, 0))
    bspec = pl.BlockSpec((1, C), lambda b, t: (0, 0))
    tabspec = pl.BlockSpec((tq, head_dim // 2), lambda b, t: (t, 0))
    q_h, k_h, v_h = pl.pallas_call(
        qkv_kernel,
        grid=(B, T // tq),
        in_specs=[
            pl.BlockSpec((1, tq, C), lambda b, t: (b, t, 0)),        # x
            wspec, wspec, wspec,                                     # w_q/w_k/w_v
            bspec, bspec, bspec,                                     # b_q/b_k/b_v
            tabspec, tabspec,                                        # cos / sin
        ],
        out_specs=[pl.BlockSpec((1, n_heads, tq, head_dim),
                                lambda b, t: (b, 0, t, 0))] * 3,
        out_shape=[head_shape] * 3,
        compiler_params=pltpu.CompilerParams(
            dimension_semantics=("parallel", "parallel"),
            vmem_limit_bytes=vmem_limit),
        cost_estimate=pl.CostEstimate(
            flops=int(2 * B * T * C * 3 * C),
            transcendentals=0,
            bytes_accessed=int(4 * B * T * C * itemsize + 3 * C * C * itemsize)),
    )(x, w_q, w_k, w_v, b_q, b_k, b_v, cos_t, sin_t)

    # ---- stage 2: flash attention (online softmax) ---------------------------
    mask_n = _normalize_mask(mask, B, T)
    has_mask = mask_n is not None
    if has_mask and tk != T and tk % 128 != 0:
        raise ValueError("kv_block must be a multiple of 128 (or the full "
                         "sequence) when an attention mask is supplied")

    if causal:
        def kv_map(b, qi, ki):
            # Clamp past-diagonal kv tiles to the diagonal tile: consecutive
            # steps then map to the same block and the pipeline skips the DMA.
            return (b, 0, jnp.minimum(ki, ((qi + 1) * tq - 1) // tk), 0)
    else:
        def kv_map(b, qi, ki):
            return (b, 0, ki, 0)

    in_specs = [
        pl.BlockSpec((1, n_heads, tq, head_dim),
                     lambda b, qi, ki: (b, 0, qi, 0)),               # q
        pl.BlockSpec((1, n_heads, tk, head_dim), kv_map),            # k
        pl.BlockSpec((1, n_heads, tk, head_dim), kv_map),            # v
    ]
    operands = [q_h, k_h, v_h]
    if has_mask:
        mB, mQ, _ = mask_n.shape
        qb = tq if mQ != 1 else 1

        def mask_map(b, qi, ki, _mB=mB, _mQ=mQ):
            return (b if _mB != 1 else 0, qi if _mQ != 1 else 0, ki)

        in_specs.append(pl.BlockSpec((1, qb, tk), mask_map))
        operands.append(mask_n)

    flash_kernel = functools.partial(
        _flash_attn_kernel, n_heads=n_heads, head_dim=head_dim, tq=tq, tk=tk,
        causal=causal, has_mask=has_mask, approx_recip=not is_f32)

    causal_factor = 0.5 if causal else 1.0
    kv_restream = T // tq
    bytes_acc = (B * T * C * itemsize                       # q
                 + 2 * B * T * C * itemsize * kv_restream   # k/v re-read per q tile
                 + B * T * C * itemsize)                    # attention output write
    if has_mask:
        bytes_acc += B * T * T * 4                          # mask tiles (upper bound)

    attn = pl.pallas_call(
        flash_kernel,
        grid=(B, T // tq, T // tk),
        in_specs=in_specs,
        out_specs=pl.BlockSpec((1, tq, C), lambda b, qi, ki: (b, qi, 0)),
        out_shape=jax.ShapeDtypeStruct((B, T, C), dtype),
        scratch_shapes=[
            pltpu.VMEM((n_heads, tq, 1), jnp.float32),          # running max
            pltpu.VMEM((n_heads, tq, 1), jnp.float32),          # running sum
            pltpu.VMEM((n_heads, tq, head_dim), jnp.float32),   # running acc
        ],
        compiler_params=pltpu.CompilerParams(
            dimension_semantics=("parallel", "parallel", "arbitrary"),
            vmem_limit_bytes=vmem_limit),
        cost_estimate=pl.CostEstimate(
            flops=int(4 * B * n_heads * T * T * head_dim * causal_factor),
            transcendentals=int(B * n_heads * T * T * causal_factor),
            bytes_accessed=int(bytes_acc)),
    )(*operands)

    # ---- stage 3: output projection (single K=C MXU contraction) ------------
    tm = tq
    out = pl.pallas_call(
        _out_proj_kernel,
        grid=(B, T // tm),
        in_specs=[
            pl.BlockSpec((1, tm, C), lambda b, t: (b, t, 0)),        # attn
            pl.BlockSpec((C, C), lambda b, t: (0, 0)),               # w_proj
            pl.BlockSpec((1, C), lambda b, t: (0, 0)),               # b_proj
        ],
        out_specs=pl.BlockSpec((1, tm, C), lambda b, t: (b, t, 0)),
        out_shape=jax.ShapeDtypeStruct((B, T, C), dtype),
        compiler_params=pltpu.CompilerParams(
            dimension_semantics=("parallel", "parallel"),
            vmem_limit_bytes=vmem_limit),
        cost_estimate=pl.CostEstimate(
            flops=int(2 * B * T * C * C),
            transcendentals=0,
            bytes_accessed=int(2 * B * T * C * itemsize + C * C * itemsize)),
    )(attn, w_proj, b_proj)
    return out


# ---------------------------------------------------------------------------
# Parameters + pure-JAX reference (mirrors the PyTorch forward, dropout = id).
# ---------------------------------------------------------------------------
def init_params(key, dim):
    k1, k2, k3, k4 = jax.random.split(key, 4)
    bound = 1.0 / math.sqrt(dim)
    return {
        'w_qkv': jax.random.uniform(k1, (dim, 3 * dim), jnp.float32, -bound, bound),
        'b_qkv': jax.random.uniform(k2, (1, 3 * dim), jnp.float32, -bound, bound),
        'w_proj': jax.random.uniform(k3, (dim, dim), jnp.float32, -bound, bound),
        'b_proj': jax.random.uniform(k4, (1, dim), jnp.float32, -bound, bound),
    }


def hrom_attention_reference(x, params, mask=None, *, n_heads):
    B, T, C = x.shape
    head_dim = C // n_heads
    xf = x.astype(jnp.float32)
    qkv = xf @ params['w_qkv'] + params['b_qkv'][0]               # (B, T, 3C)
    qkv = qkv.reshape(B, T, 3, n_heads, head_dim)
    q, k, v = qkv[:, :, 0], qkv[:, :, 1], qkv[:, :, 2]            # (B, T, H, Dh)
    q = q.transpose(0, 2, 1, 3)
    k = k.transpose(0, 2, 1, 3)
    v = v.transpose(0, 2, 1, 3)

    cos, sin = rotary_tables(T, head_dim)

    def rot_half(t):
        t1, t2 = jnp.split(t, 2, axis=-1)
        return jnp.concatenate([-t2, t1], axis=-1)

    q = q * cos + rot_half(q) * sin
    k = k * cos + rot_half(k) * sin

    scores = jnp.einsum('bhqd,bhkd->bhqk', q, k) / math.sqrt(head_dim)
    if mask is not None:
        m = _normalize_mask(mask, B, T)
        scores = scores + m[:, None]
    probs = jax.nn.softmax(scores, axis=-1)
    out = jnp.einsum('bhqk,bhkd->bhqd', probs, v)
    out = out.transpose(0, 2, 1, 3).reshape(B, T, C)
    return out @ params['w_proj'] + params['b_proj'][0]


if __name__ == "__main__":
    # Small shapes consistent with the module (dim divisible by n_heads).
    B, T, DIM, N_HEADS = 2, 32, 128, 4

    key = jax.random.PRNGKey(0)
    k_params, k_x = jax.random.split(key)
    params = init_params(k_params, DIM)
    x = jax.random.normal(k_x, (B, T, DIM), dtype=jnp.float32)

    # 1) fp32, no mask, tiled so the online-softmax path iterates over several
    #    query and kv tiles (grid = (B, 2, 2)).
    out = hrom_attention(x, params, mask=None, n_heads=N_HEADS,
                         q_block=16, kv_block=16)
    out = jax.block_until_ready(out)
    ref = hrom_attention_reference(x, params, mask=None, n_heads=N_HEADS)
    assert out.shape == (B, T, DIM)
    err = float(jnp.max(jnp.abs(out - ref)))
    assert err < 5e-2, f"fp32 no-mask max abs err = {err}"

    # 2) fp32 with a shared (1, T, T) additive causal mask (explicit-mask path;
    #    no per-batch / per-head broadcast is materialized).
    causal_mask = jnp.where(jnp.arange(T)[:, None] >= jnp.arange(T)[None, :],
                            0.0, -1e9).astype(jnp.float32)[None]  # (1, T, T)
    out_m = hrom_attention(x, params, mask=causal_mask, n_heads=N_HEADS)
    out_m = jax.block_until_ready(out_m)
    ref_m = hrom_attention_reference(x, params, mask=causal_mask, n_heads=N_HEADS)
    err_m = float(jnp.max(jnp.abs(out_m - ref_m)))
    assert err_m < 5e-2, f"fp32 explicit-mask max abs err = {err_m}"

    # 3) fp32 in-kernel causal fast path (iota mask + kv-tile skipping).
    out_c = hrom_attention(x, params, mask=None, n_heads=N_HEADS, causal=True,
                           q_block=16, kv_block=16)
    out_c = jax.block_until_ready(out_c)
    err_c = float(jnp.max(jnp.abs(out_c - ref_m)))
    assert err_c < 5e-2, f"fp32 causal fast-path max abs err = {err_c}"

    # 4) bf16 activations/weights: bf16 MXU operands, fp32 accumulation.
    x_bf16 = x.astype(jnp.bfloat16)
    out_bf = hrom_attention(x_bf16, params, mask=None, n_heads=N_HEADS)
    out_bf = jax.block_until_ready(out_bf).astype(jnp.float32)
    assert bool(jnp.all(jnp.isfinite(out_bf)))
    err_bf = float(jnp.max(jnp.abs(out_bf - ref)))
    assert err_bf < 0.3, f"bf16 no-mask max abs err = {err_bf}"

    print("KERNEL_OK")
</pallas_src>

<mosaic_0001>
module attributes {stable_mosaic.version = 11 : i64} {
  func.func @_qkv_rope_kernel(%arg0: i32, %arg1: i32, %arg2: memref<1x16x128xf32, #tpu.memory_space<vmem>>, %arg3: memref<128x128xf32, #tpu.memory_space<vmem>>, %arg4: memref<128x128xf32, #tpu.memory_space<vmem>>, %arg5: memref<128x128xf32, #tpu.memory_space<vmem>>, %arg6: memref<1x128xf32, #tpu.memory_space<vmem>>, %arg7: memref<1x128xf32, #tpu.memory_space<vmem>>, %arg8: memref<1x128xf32, #tpu.memory_space<vmem>>, %arg9: memref<16x16xf32, #tpu.memory_space<vmem>>, %arg10: memref<16x16xf32, #tpu.memory_space<vmem>>, %arg11: memref<1x4x16x32xf32, #tpu.memory_space<vmem>>, %arg12: memref<1x4x16x32xf32, #tpu.memory_space<vmem>>, %arg13: memref<1x4x16x32xf32, #tpu.memory_space<vmem>>) attributes {dimension_semantics = [#tpu.dimension_semantics<parallel>, #tpu.dimension_semantics<parallel>], iteration_bounds = array<i64: 2, 2>, scalar_prefetch = 0 : i64, scratch_operands = 0 : i64, tpu.core_type = #tpu.core_type<tc>, window_params = [{transform_indices = @transform_0, window_bounds = array<i64: 1, 16, 128>}, {pipeline_mode = #tpu.pipeline_mode<synchronous>, transform_indices = @transform_1, window_bounds = array<i64: 128, 128>}, {pipeline_mode = #tpu.pipeline_mode<synchronous>, transform_indices = @transform_2, window_bounds = array<i64: 128, 128>}, {pipeline_mode = #tpu.pipeline_mode<synchronous>, transform_indices = @transform_3, window_bounds = array<i64: 128, 128>}, {pipeline_mode = #tpu.pipeline_mode<synchronous>, transform_indices = @transform_4, window_bounds = array<i64: 1, 128>}, {pipeline_mode = #tpu.pipeline_mode<synchronous>, transform_indices = @transform_5, window_bounds = array<i64: 1, 128>}, {pipeline_mode = #tpu.pipeline_mode<synchronous>, transform_indices = @transform_6, window_bounds = array<i64: 1, 128>}, {transform_indices = @transform_7, window_bounds = array<i64: 16, 16>}, {transform_indices = @transform_8, window_bounds = array<i64: 16, 16>}, {transform_indices = @transform_9, window_bounds = array<i64: 1, 4, 16, 32>}, {transform_indices = @transform_10, window_bounds = array<i64: 1, 4, 16, 32>}, {transform_indices = @transform_11, window_bounds = array<i64: 1, 4, 16, 32>}]} {
    %c0 = arith.constant 0 : index
    %c0_0 = arith.constant 0 : index
    %c0_1 = arith.constant 0 : index
    %0 = vector.load %arg2[%c0, %c0_0, %c0_1] : memref<1x16x128xf32, #tpu.memory_space<vmem>>, vector<1x16x128xf32>
    %1 = vector.shape_cast %0 : vector<1x16x128xf32> to vector<16x128xf32>
    %c0_2 = arith.constant 0 : index
    %c0_3 = arith.constant 0 : index
    %2 = vector.load %arg9[%c0_2, %c0_3] : memref<16x16xf32, #tpu.memory_space<vmem>>, vector<16x16xf32>
    %c0_4 = arith.constant 0 : index
    %c0_5 = arith.constant 0 : index
    %3 = vector.load %arg10[%c0_4, %c0_5] : memref<16x16xf32, #tpu.memory_space<vmem>>, vector<16x16xf32>
    %c0_6 = arith.constant 0 : index
    %c0_7 = arith.constant 0 : index
    %4 = vector.load %arg3[%c0_6, %c0_7] : memref<128x128xf32, #tpu.memory_space<vmem>>, vector<128x128xf32>
    %cst = arith.constant dense<0.000000e+00> : vector<16x128xf32>
    %5 = tpu.matmul %1, %4, %cst {dimension_numbers = #tpu.dot_dimension_numbers<[1], [0], [0], [1], [0, 0, 1, 1], [], []>} : vector<16x128xf32>, vector<128x128xf32>, vector<16x128xf32> -> vector<16x128xf32>
    %c0_8 = arith.constant 0 : index
    %c0_9 = arith.constant 0 : index
    %6 = vector.load %arg6[%c0_8, %c0_9] : memref<1x128xf32, #tpu.memory_space<vmem>>, vector<1x128xf32>
    %7 = vector.broadcast %6 : vector<1x128xf32> to vector<16x128xf32>
    %8 = arith.addf %5, %7 : vector<16x128xf32>
    %9 = vector.extract_strided_slice %8 {offsets = [0, 0], sizes = [16, 16], strides = [1, 1]} : vector<16x128xf32> to vector<16x16xf32>
    %10 = vector.extract_strided_slice %8 {offsets = [0, 16], sizes = [16, 16], strides = [1, 1]} : vector<16x128xf32> to vector<16x16xf32>
    %11 = arith.mulf %9, %2 : vector<16x16xf32>
    %12 = arith.mulf %10, %3 : vector<16x16xf32>
    %13 = arith.subf %11, %12 : vector<16x16xf32>
    %c0_10 = arith.constant 0 : index
    %c0_11 = arith.constant 0 : index
    %c0_12 = arith.constant 0 : index
    %c0_13 = arith.constant 0 : index
    %14 = vector.load %arg11[%c0_10, %c0_11, %c0_12, %c0_13] : memref<1x4x16x32xf32, #tpu.memory_space<vmem>>, vector<1x1x16x16xf32>
    %15 = vector.shape_cast %14 : vector<1x1x16x16xf32> to vector<16x16xf32>
    %16 = vector.shape_cast %13 : vector<16x16xf32> to vector<1x1x16x16xf32>
    tpu.vector_store %arg11[%c0_10, %c0_11, %c0_12, %c0_13], %16 {strides = array<i32>} : memref<1x4x16x32xf32, #tpu.memory_space<vmem>>, vector<1x1x16x16xf32>,
    %17 = arith.mulf %10, %2 : vector<16x16xf32>
    %18 = arith.mulf %9, %3 : vector<16x16xf32>
    %19 = arith.addf %17, %18 : vector<16x16xf32>
    %c0_14 = arith.constant 0 : index
    %c0_15 = arith.constant 0 : index
    %c0_16 = arith.constant 0 : index
    %c16 = arith.constant 16 : index
    %20 = vector.load %arg11[%c0_14, %c0_15, %c0_16, %c16] : memref<1x4x16x32xf32, #tpu.memory_space<vmem>>, vector<1x1x16x16xf32>
    %21 = vector.shape_cast %20 : vector<1x1x16x16xf32> to vector<16x16xf32>
    %22 = vector.shape_cast %19 : vector<16x16xf32> to vector<1x1x16x16xf32>
    tpu.vector_store %arg11[%c0_14, %c0_15, %c0_16, %c16], %22 {strides = array<i32>} : memref<1x4x16x32xf32, #tpu.memory_space<vmem>>, vector<1x1x16x16xf32>,
    %23 = vector.extract_strided_slice %8 {offsets = [0, 32], sizes = [16, 16], strides = [1, 1]} : vector<16x128xf32> to vector<16x16xf32>
    %24 = vector.extract_strided_slice %8 {offsets = [0, 48], sizes = [16, 16], strides = [1, 1]} : vector<16x128xf32> to vector<16x16xf32>
    %25 = arith.mulf %23, %2 : vector<16x16xf32>
    %26 = arith.mulf %24, %3 : vector<16x16xf32>
    %27 = arith.subf %25, %26 : vector<16x16xf32>
    %c0_17 = arith.constant 0 : index
    %c1 = arith.constant 1 : index
    %c0_18 = arith.constant 0 : index
    %c0_19 = arith.constant 0 : index
    %28 = vector.load %arg11[%c0_17, %c1, %c0_18, %c0_19] : memref<1x4x16x32xf32, #tpu.memory_space<vmem>>, vector<1x1x16x16xf32>
    %29 = vector.shape_cast %28 : vector<1x1x16x16xf32> to vector<16x16xf32>
    %30 = vector.shape_cast %27 : vector<16x16xf32> to vector<1x1x16x16xf32>
    tpu.vector_store %arg11[%c0_17, %c1, %c0_18, %c0_19], %30 {strides = array<i32>} : memref<1x4x16x32xf32, #tpu.memory_space<vmem>>, vector<1x1x16x16xf32>,
    %31 = arith.mulf %24, %2 : vector<16x16xf32>
    %32 = arith.mulf %23, %3 : vector<16x16xf32>
    %33 = arith.addf %31, %32 : vector<16x16xf32>
    %c0_20 = arith.constant 0 : index
    %c1_21 = arith.constant 1 : index
    %c0_22 = arith.constant 0 : index
    %c16_23 = arith.constant 16 : index
    %34 = vector.load %arg11[%c0_20, %c1_21, %c0_22, %c16_23] : memref<1x4x16x32xf32, #tpu.memory_space<vmem>>, vector<1x1x16x16xf32>
    %35 = vector.shape_cast %34 : vector<1x1x16x16xf32> to vector<16x16xf32>
    %36 = vector.shape_cast %33 : vector<16x16xf32> to vector<1x1x16x16xf32>
    tpu.vector_store %arg11[%c0_20, %c1_21, %c0_22, %c16_23], %36 {strides = array<i32>} : memref<1x4x16x32xf32, #tpu.memory_space<vmem>>, vector<1x1x16x16xf32>,
    %37 = vector.extract_strided_slice %8 {offsets = [0, 64], sizes = [16, 16], strides = [1, 1]} : vector<16x128xf32> to vector<16x16xf32>
    %38 = vector.extract_strided_slice %8 {offsets = [0, 80], sizes = [16, 16], strides = [1, 1]} : vector<16x128xf32> to vector<16x16xf32>
    %39 = arith.mulf %37, %2 : vector<16x16xf32>
    %40 = arith.mulf %38, %3 : vector<16x16xf32>
    %41 = arith.subf %39, %40 : vector<16x16xf32>
    %c0_24 = arith.constant 0 : index
    %c2 = arith.constant 2 : index
    %c0_25 = arith.constant 0 : index
    %c0_26 = arith.constant 0 : index
    %42 = vector.load %arg11[%c0_24, %c2, %c0_25, %c0_26] : memref<1x4x16x32xf32, #tpu.memory_space<vmem>>, vector<1x1x16x16xf32>
    %43 = vector.shape_cast %42 : vector<1x1x16x16xf32> to vector<16x16xf32>
    %44 = vector.shape_cast %41 : vector<16x16xf32> to vector<1x1x16x16xf32>
    tpu.vector_store %arg11[%c0_24, %c2, %c0_25, %c0_26], %44 {strides = array<i32>} : memref<1x4x16x32xf32, #tpu.memory_space<vmem>>, vector<1x1x16x16xf32>,
    %45 = arith.mulf %38, %2 : vector<16x16xf32>
    %46 = arith.mulf %37, %3 : vector<16x16xf32>
    %47 = arith.addf %45, %46 : vector<16x16xf32>
    %c0_27 = arith.constant 0 : index
    %c2_28 = arith.constant 2 : index
    %c0_29 = arith.constant 0 : index
    %c16_30 = arith.constant 16 : index
    %48 = vector.load %arg11[%c0_27, %c2_28, %c0_29, %c16_30] : memref<1x4x16x32xf32, #tpu.memory_space<vmem>>, vector<1x1x16x16xf32>
    %49 = vector.shape_cast %48 : vector<1x1x16x16xf32> to vector<16x16xf32>
    %50 = vector.shape_cast %47 : vector<16x16xf32> to vector<1x1x16x16xf32>
    tpu.vector_store %arg11[%c0_27, %c2_28, %c0_29, %c16_30], %50 {strides = array<i32>} : memref<1x4x16x32xf32, #tpu.memory_space<vmem>>, vector<1x1x16x16xf32>,
    %51 = vector.extract_strided_slice %8 {offsets = [0, 96], sizes = [16, 16], strides = [1, 1]} : vector<16x128xf32> to vector<16x16xf32>
    %52 = vector.extract_strided_slice %8 {offsets = [0, 112], sizes = [16, 16], strides = [1, 1]} : vector<16x128xf32> to vector<16x16xf32>
    %53 = arith.mulf %51, %2 : vector<16x16xf32>
    %54 = arith.mulf %52, %3 : vector<16x16xf32>
    %55 = arith.subf %53, %54 : vector<16x16xf32>
    %c0_31 = arith.constant 0 : index
    %c3 = arith.constant 3 : index
    %c0_32 = arith.constant 0 : index
    %c0_33 = arith.constant 0 : index
    %56 = vector.load %arg11[%c0_31, %c3, %c0_32, %c0_33] : memref<1x4x16x32xf32, #tpu.memory_space<vmem>>, vector<1x1x16x16xf32>
    %57 = vector.shape_cast %56 : vector<1x1x16x16xf32> to vector<16x16xf32>
    %58 = vector.shape_cast %55 : vector<16x16xf32> to vector<1x1x16x16xf32>
    tpu.vector_store %arg11[%c0_31, %c3, %c0_32, %c0_33], %58 {strides = array<i32>} : memref<1x4x16x32xf32, #tpu.memory_space<vmem>>, vector<1x1x16x16xf32>,
    %59 = arith.mulf %52, %2 : vector<16x16xf32>
    %60 = arith.mulf %51, %3 : vector<16x16xf32>
    %61 = arith.addf %59, %60 : vector<16x16xf32>
    %c0_34 = arith.constant 0 : index
    %c3_35 = arith.constant 3 : index
    %c0_36 = arith.constant 0 : index
    %c16_37 = arith.constant 16 : index
    %62 = vector.load %arg11[%c0_34, %c3_35, %c0_36, %c16_37] : memref<1x4x16x32xf32, #tpu.memory_space<vmem>>, vector<1x1x16x16xf32>
    %63 = vector.shape_cast %62 : vector<1x1x16x16xf32> to vector<16x16xf32>
    %64 = vector.shape_cast %61 : vector<16x16xf32> to vector<1x1x16x16xf32>
    tpu.vector_store %arg11[%c0_34, %c3_35, %c0_36, %c16_37], %64 {strides = array<i32>} : memref<1x4x16x32xf32, #tpu.memory_space<vmem>>, vector<1x1x16x16xf32>,
    %c0_38 = arith.constant 0 : index
    %c0_39 = arith.constant 0 : index
    %65 = vector.load %arg4[%c0_38, %c0_39] : memref<128x128xf32, #tpu.memory_space<vmem>>, vector<128x128xf32>
    %cst_40 = arith.constant dense<0.000000e+00> : vector<16x128xf32>
    %66 = tpu.matmul %1, %65, %cst_40 {dimension_numbers = #tpu.dot_dimension_numbers<[1], [0], [0], [1], [0, 0, 1, 1], [], []>} : vector<16x128xf32>, vector<128x128xf32>, vector<16x128xf32> -> vector<16x128xf32>
    %c0_41 = arith.constant 0 : index
    %c0_42 = arith.constant 0 : index
    %67 = vector.load %arg7[%c0_41, %c0_42] : memref<1x128xf32, #tpu.memory_space<vmem>>, vector<1x128xf32>
    %68 = vector.broadcast %67 : vector<1x128xf32> to vector<16x128xf32>
    %69 = arith.addf %66, %68 : vector<16x128xf32>
    %70 = vector.extract_strided_slice %69 {offsets = [0, 0], sizes = [16, 16], strides = [1, 1]} : vector<16x128xf32> to vector<16x16xf32>
    %71 = vector.extract_strided_slice %69 {offsets = [0, 16], sizes = [16, 16], strides = [1, 1]} : vector<16x128xf32> to vector<16x16xf32>
    %72 = arith.mulf %70, %2 : vector<16x16xf32>
    %73 = arith.mulf %71, %3 : vector<16x16xf32>
    %74 = arith.subf %72, %73 : vector<16x16xf32>
    %c0_43 = arith.constant 0 : index
    %c0_44 = arith.constant 0 : index
    %c0_45 = arith.constant 0 : index
    %c0_46 = arith.constant 0 : index
    %75 = vector.load %arg12[%c0_43, %c0_44, %c0_45, %c0_46] : memref<1x4x16x32xf32, #tpu.memory_space<vmem>>, vector<1x1x16x16xf32>
    %76 = vector.shape_cast %75 : vector<1x1x16x16xf32> to vector<16x16xf32>
    %77 = vector.shape_cast %74 : vector<16x16xf32> to vector<1x1x16x16xf32>
    tpu.vector_store %arg12[%c0_43, %c0_44, %c0_45, %c0_46], %77 {strides = array<i32>} : memref<1x4x16x32xf32, #tpu.memory_space<vmem>>, vector<1x1x16x16xf32>,
    %78 = arith.mulf %71, %2 : vector<16x16xf32>
    %79 = arith.mulf %70, %3 : vector<16x16xf32>
    %80 = arith.addf %78, %79 : vector<16x16xf32>
    %c0_47 = arith.constant 0 : index
    %c0_48 = arith.constant 0 : index
    %c0_49 = arith.constant 0 : index
    %c16_50 = arith.constant 16 : index
    %81 = vector.load %arg12[%c0_47, %c0_48, %c0_49, %c16_50] : memref<1x4x16x32xf32, #tpu.memory_space<vmem>>, vector<1x1x16x16xf32>
    %82 = vector.shape_cast %81 : vector<1x1x16x16xf32> to vector<16x16xf32>
    %83 = vector.shape_cast %80 : vector<16x16xf32> to vector<1x1x16x16xf32>
    tpu.vector_store %arg12[%c0_47, %c0_48, %c0_49, %c16_50], %83 {strides = array<i32>} : memref<1x4x16x32xf32, #tpu.memory_space<vmem>>, vector<1x1x16x16xf32>,
    %84 = vector.extract_strided_slice %69 {offsets = [0, 32], sizes = [16, 16], strides = [1, 1]} : vector<16x128xf32> to vector<16x16xf32>
    %85 = vector.extract_strided_slice %69 {offsets = [0, 48], sizes = [16, 16], strides = [1, 1]} : vector<16x128xf32> to vector<16x16xf32>
    %86 = arith.mulf %84, %2 : vector<16x16xf32>
    %87 = arith.mulf %85, %3 : vector<16x16xf32>
    %88 = arith.subf %86, %87 : vector<16x16xf32>
    %c0_51 = arith.constant 0 : index
    %c1_52 = arith.constant 1 : index
    %c0_53 = arith.constant 0 : index
    %c0_54 = arith.constant 0 : index
    %89 = vector.load %arg12[%c0_51, %c1_52, %c0_53, %c0_54] : memref<1x4x16x32xf32, #tpu.memory_space<vmem>>, vector<1x1x16x16xf32>
    %90 = vector.shape_cast %89 : vector<1x1x16x16xf32> to vector<16x16xf32>
    %91 = vector.shape_cast %88 : vector<16x16xf32> to vector<1x1x16x16xf32>
    tpu.vector_store %arg12[%c0_51, %c1_52, %c0_53, %c0_54], %91 {strides = array<i32>} : memref<1x4x16x32xf32, #tpu.memory_space<vmem>>, vector<1x1x16x16xf32>,
    %92 = arith.mulf %85, %2 : vector<16x16xf32>
    %93 = arith.mulf %84, %3 : vector<16x16xf32>
    %94 = arith.addf %92, %93 : vector<16x16xf32>
    %c0_55 = arith.constant 0 : index
    %c1_56 = arith.constant 1 : index
    %c0_57 = arith.constant 0 : index
    %c16_58 = arith.constant 16 : index
    %95 = vector.load %arg12[%c0_55, %c1_56, %c0_57, %c16_58] : memref<1x4x16x32xf32, #tpu.memory_space<vmem>>, vector<1x1x16x16xf32>
    %96 = vector.shape_cast %95 : vector<1x1x16x16xf32> to vector<16x16xf32>
    %97 = vector.shape_cast %94 : vector<16x16xf32> to vector<1x1x16x16xf32>
    tpu.vector_store %arg12[%c0_55, %c1_56, %c0_57, %c16_58], %97 {strides = array<i32>} : memref<1x4x16x32xf32, #tpu.memory_space<vmem>>, vector<1x1x16x16xf32>,
    %98 = vector.extract_strided_slice %69 {offsets = [0, 64], sizes = [16, 16], strides = [1, 1]} : vector<16x128xf32> to vector<16x16xf32>
    %99 = vector.extract_strided_slice %69 {offsets = [0, 80], sizes = [16, 16], strides = [1, 1]} : vector<16x128xf32> to vector<16x16xf32>
    %100 = arith.mulf %98, %2 : vector<16x16xf32>
    %101 = arith.mulf %99, %3 : vector<16x16xf32>
    %102 = arith.subf %100, %101 : vector<16x16xf32>
    %c0_59 = arith.constant 0 : index
    %c2_60 = arith.constant 2 : index
    %c0_61 = arith.constant 0 : index
    %c0_62 = arith.constant 0 : index
    %103 = vector.load %arg12[%c0_59, %c2_60, %c0_61, %c0_62] : memref<1x4x16x32xf32, #tpu.memory_space<vmem>>, vector<1x1x16x16xf32>
    %104 = vector.shape_cast %103 : vector<1x1x16x16xf32> to vector<16x16xf32>
    %105 = vector.shape_cast %102 : vector<16x16xf32> to vector<1x1x16x16xf32>
    tpu.vector_store %arg12[%c0_59, %c2_60, %c0_61, %c0_62], %105 {strides = array<i32>} : memref<1x4x16x32xf32, #tpu.memory_space<vmem>>, vector<1x1x16x16xf32>,
    %106 = arith.mulf %99, %2 : vector<16x16xf32>
    %107 = arith.mulf %98, %3 : vector<16x16xf32>
    %108 = arith.addf %106, %107 : vector<16x16xf32>
    %c0_63 = arith.constant 0 : index
    %c2_64 = arith.constant 2 : index
    %c0_65 = arith.constant 0 : index
    %c16_66 = arith.constant 16 : index
    %109 = vector.load %arg12[%c0_63, %c2_64, %c0_65, %c16_66] : memref<1x4x16x32xf32, #tpu.memory_space<vmem>>, vector<1x1x16x16xf32>
    %110 = vector.shape_cast %109 : vector<1x1x16x16xf32> to vector<16x16xf32>
    %111 = vector.shape_cast %108 : vector<16x16xf32> to vector<1x1x16x16xf32>
    tpu.vector_store %arg12[%c0_63, %c2_64, %c0_65, %c16_66], %111 {strides = array<i32>} : memref<1x4x16x32xf32, #tpu.memory_space<vmem>>, vector<1x1x16x16xf32>,
    %112 = vector.extract_strided_slice %69 {offsets = [0, 96], sizes = [16, 16], strides = [1, 1]} : vector<16x128xf32> to vector<16x16xf32>
    %113 = vector.extract_strided_slice %69 {offsets = [0, 112], sizes = [16, 16], strides = [1, 1]} : vector<16x128xf32> to vector<16x16xf32>
    %114 = arith.mulf %112, %2 : vector<16x16xf32>
    %115 = arith.mulf %113, %3 : vector<16x16xf32>
    %116 = arith.subf %114, %115 : vector<16x16xf32>
    %c0_67 = arith.constant 0 : index
    %c3_68 = arith.constant 3 : index
    %c0_69 = arith.constant 0 : index
    %c0_70 = arith.constant 0 : index
    %117 = vector.load %arg12[%c0_67, %c3_68, %c0_69, %c0_70] : memref<1x4x16x32xf32, #tpu.memory_space<vmem>>, vector<1x1x16x16xf32>
    %118 = vector.shape_cast %117 : vector<1x1x16x16xf32> to vector<16x16xf32>
    %119 = vector.shape_cast %116 : vector<16x16xf32> to vector<1x1x16x16xf32>
    tpu.vector_store %arg12[%c0_67, %c3_68, %c0_69, %c0_70], %119 {strides = array<i32>} : memref<1x4x16x32xf32, #tpu.memory_space<vmem>>, vector<1x1x16x16xf32>,
    %120 = arith.mulf %113, %2 : vector<16x16xf32>
    %121 = arith.mulf %112, %3 : vector<16x16xf32>
    %122 = arith.addf %120, %121 : vector<16x16xf32>
    %c0_71 = arith.constant 0 : index
    %c3_72 = arith.constant 3 : index
    %c0_73 = arith.constant 0 : index
    %c16_74 = arith.constant 16 : index
    %123 = vector.load %arg12[%c0_71, %c3_72, %c0_73, %c16_74] : memref<1x4x16x32xf32, #tpu.memory_space<vmem>>, vector<1x1x16x16xf32>
    %124 = vector.shape_cast %123 : vector<1x1x16x16xf32> to vector<16x16xf32>
    %125 = vector.shape_cast %122 : vector<16x16xf32> to vector<1x1x16x16xf32>
    tpu.vector_store %arg12[%c0_71, %c3_72, %c0_73, %c16_74], %125 {strides = array<i32>} : memref<1x4x16x32xf32, #tpu.memory_space<vmem>>, vector<1x1x16x16xf32>,
    %c0_75 = arith.constant 0 : index
    %c0_76 = arith.constant 0 : index
    %126 = vector.load %arg5[%c0_75, %c0_76] : memref<128x128xf32, #tpu.memory_space<vmem>>, vector<128x128xf32>
    %cst_77 = arith.constant dense<0.000000e+00> : vector<16x128xf32>
    %127 = tpu.matmul %1, %126, %cst_77 {dimension_numbers = #tpu.dot_dimension_numbers<[1], [0], [0], [1], [0, 0, 1, 1], [], []>} : vector<16x128xf32>, vector<128x128xf32>, vector<16x128xf32> -> vector<16x128xf32>
    %c0_78 = arith.constant 0 : index
    %c0_79 = arith.constant 0 : index
    %128 = vector.load %arg8[%c0_78, %c0_79] : memref<1x128xf32, #tpu.memory_space<vmem>>, vector<1x128xf32>
    %129 = vector.broadcast %128 : vector<1x128xf32> to vector<16x128xf32>
    %130 = arith.addf %127, %129 : vector<16x128xf32>
    %131 = vector.extract_strided_slice %130 {offsets = [0, 0], sizes = [16, 32], strides = [1, 1]} : vector<16x128xf32> to vector<16x32xf32>
    %c0_80 = arith.constant 0 : index
    %c0_81 = arith.constant 0 : index
    %c0_82 = arith.constant 0 : index
    %c0_83 = arith.constant 0 : index
    %132 = vector.load %arg13[%c0_80, %c0_81, %c0_82, %c0_83] : memref<1x4x16x32xf32, #tpu.memory_space<vmem>>, vector<1x1x16x32xf32>
    %133 = vector.shape_cast %132 : vector<1x1x16x32xf32> to vector<16x32xf32>
    %134 = vector.shape_cast %131 : vector<16x32xf32> to vector<1x1x16x32xf32>
    tpu.vector_store %arg13[%c0_80, %c0_81, %c0_82, %c0_83], %134 {strides = array<i32>} : memref<1x4x16x32xf32, #tpu.memory_space<vmem>>, vector<1x1x16x32xf32>,
    %135 = vector.extract_strided_slice %130 {offsets = [0, 32], sizes = [16, 32], strides = [1, 1]} : vector<16x128xf32> to vector<16x32xf32>
    %c0_84 = arith.constant 0 : index
    %c1_85 = arith.constant 1 : index
    %c0_86 = arith.constant 0 : index
    %c0_87 = arith.constant 0 : index
    %136 = vector.load %arg13[%c0_84, %c1_85, %c0_86, %c0_87] : memref<1x4x16x32xf32, #tpu.memory_space<vmem>>, vector<1x1x16x32xf32>
    %137 = vector.shape_cast %136 : vector<1x1x16x32xf32> to vector<16x32xf32>
    %138 = vector.shape_cast %135 : vector<16x32xf32> to vector<1x1x16x32xf32>
    tpu.vector_store %arg13[%c0_84, %c1_85, %c0_86, %c0_87], %138 {strides = array<i32>} : memref<1x4x16x32xf32, #tpu.memory_space<vmem>>, vector<1x1x16x32xf32>,
    %139 = vector.extract_strided_slice %130 {offsets = [0, 64], sizes = [16, 32], strides = [1, 1]} : vector<16x128xf32> to vector<16x32xf32>
    %c0_88 = arith.constant 0 : index
    %c2_89 = arith.constant 2 : index
    %c0_90 = arith.constant 0 : index
    %c0_91 = arith.constant 0 : index
    %140 = vector.load %arg13[%c0_88, %c2_89, %c0_90, %c0_91] : memref<1x4x16x32xf32, #tpu.memory_space<vmem>>, vector<1x1x16x32xf32>
    %141 = vector.shape_cast %140 : vector<1x1x16x32xf32> to vector<16x32xf32>
    %142 = vector.shape_cast %139 : vector<16x32xf32> to vector<1x1x16x32xf32>
    tpu.vector_store %arg13[%c0_88, %c2_89, %c0_90, %c0_91], %142 {strides = array<i32>} : memref<1x4x16x32xf32, #tpu.memory_space<vmem>>, vector<1x1x16x32xf32>,
    %143 = vector.extract_strided_slice %130 {offsets = [0, 96], sizes = [16, 32], strides = [1, 1]} : vector<16x128xf32> to vector<16x32xf32>
    %c0_92 = arith.constant 0 : index
    %c3_93 = arith.constant 3 : index
    %c0_94 = arith.constant 0 : index
    %c0_95 = arith.constant 0 : index
    %144 = vector.load %arg13[%c0_92, %c3_93, %c0_94, %c0_95] : memref<1x4x16x32xf32, #tpu.memory_space<vmem>>, vector<1x1x16x32xf32>
    %145 = vector.shape_cast %144 : vector<1x1x16x32xf32> to vector<16x32xf32>
    %146 = vector.shape_cast %143 : vector<16x32xf32> to vector<1x1x16x32xf32>
    tpu.vector_store %arg13[%c0_92, %c3_93, %c0_94, %c0_95], %146 {strides = array<i32>} : memref<1x4x16x32xf32, #tpu.memory_space<vmem>>, vector<1x1x16x32xf32>,
    return
  }
  func.func @transform_0(%arg0: i32, %arg1: i32) -> (i32, i32, i32) {
    %c0_i32 = arith.constant 0 : i32
    %c0_i32_0 = arith.constant 0 : i32
    return %arg0, %arg1, %c0_i32 : i32, i32, i32
  }
  func.func @transform_1(%arg0: i32, %arg1: i32) -> (i32, i32) {
    %c0_i32 = arith.constant 0 : i32
    %c0_i32_0 = arith.constant 0 : i32
    %c0_i32_1 = arith.constant 0 : i32
    return %c0_i32, %c0_i32_0 : i32, i32
  }
  func.func @transform_2(%arg0: i32, %arg1: i32) -> (i32, i32) {
    %c0_i32 = arith.constant 0 : i32
    %c0_i32_0 = arith.constant 0 : i32
    %c0_i32_1 = arith.constant 0 : i32
    return %c0_i32, %c0_i32_0 : i32, i32
  }
  func.func @transform_3(%arg0: i32, %arg1: i32) -> (i32, i32) {
    %c0_i32 = arith.constant 0 : i32
    %c0_i32_0 = arith.constant 0 : i32
    %c0_i32_1 = arith.constant 0 : i32
    return %c0_i32, %c0_i32_0 : i32, i32
  }
  func.func @transform_4(%arg0: i32, %arg1: i32) -> (i32, i32) {
    %c0_i32 = arith.constant 0 : i32
    %c0_i32_0 = arith.constant 0 : i32
    %c0_i32_1 = arith.constant 0 : i32
    return %c0_i32, %c0_i32_0 : i32, i32
  }
  func.func @transform_5(%arg0: i32, %arg1: i32) -> (i32, i32) {
    %c0_i32 = arith.constant 0 : i32
    %c0_i32_0 = arith.constant 0 : i32
    %c0_i32_1 = arith.constant 0 : i32
    return %c0_i32, %c0_i32_0 : i32, i32
  }
  func.func @transform_6(%arg0: i32, %arg1: i32) -> (i32, i32) {
    %c0_i32 = arith.constant 0 : i32
    %c0_i32_0 = arith.constant 0 : i32
    %c0_i32_1 = arith.constant 0 : i32
    return %c0_i32, %c0_i32_0 : i32, i32
  }
  func.func @transform_7(%arg0: i32, %arg1: i32) -> (i32, i32) {
    %c0_i32 = arith.constant 0 : i32
    %c0_i32_0 = arith.constant 0 : i32
    return %arg1, %c0_i32 : i32, i32
  }
  func.func @transform_8(%arg0: i32, %arg1: i32) -> (i32, i32) {
    %c0_i32 = arith.constant 0 : i32
    %c0_i32_0 = arith.constant 0 : i32
    return %arg1, %c0_i32 : i32, i32
  }
  func.func @transform_9(%arg0: i32, %arg1: i32) -> (i32, i32, i32, i32) {
    %c0_i32 = arith.constant 0 : i32
    %c0_i32_0 = arith.constant 0 : i32
    %c0_i32_1 = arith.constant 0 : i32
    return %arg0, %c0_i32, %arg1, %c0_i32_0 : i32, i32, i32, i32
  }
  func.func @transform_10(%arg0: i32, %arg1: i32) -> (i32, i32, i32, i32) {
    %c0_i32 = arith.constant 0 : i32
    %c0_i32_0 = arith.constant 0 : i32
    %c0_i32_1 = arith.constant 0 : i32
    return %arg0, %c0_i32, %arg1, %c0_i32_0 : i32, i32, i32, i32
  }
  func.func @transform_11(%arg0: i32, %arg1: i32) -> (i32, i32, i32, i32) {
    %c0_i32 = arith.constant 0 : i32
    %c0_i32_0 = arith.constant 0 : i32
    %c0_i32_1 = arith.constant 0 : i32
    return %arg0, %c0_i32, %arg1, %c0_i32_0 : i32, i32, i32, i32
  }
}

</mosaic_0001>

<llo_original>
// kernel: tpu_custom_call.1
$region0: #{tpu_custom_call.1}
  #allocation0 [shape = 'u32[]', space=smem, size = 0x4, offset = 0x4, fixed_abs, tag = 'smem constant byte address 0x4 - core index']
  #allocation1 [shape = 'u32[144,128]{1,0:T(1,128)}', space=vmem, size = 0x12000, scoped, tag = 'internal scratch']
  #allocation21 [shape = 's32[]', space=sflag, size = 0x4, offset = 0, fixed_abs, tag = 'sflag constant byte address 0x0 - dummy sync flag']
  #allocation23 [shape = 's32[]', space=sflag, size = 0x4, offset = 0, fixed_abs, tag = 'sflag constant byte address 0x0 - dummy sync flag']
  #allocation25 [shape = 's32[]', space=sflag, size = 0x4, offset = 0, fixed_abs, tag = 'sflag constant byte address 0x0 - dummy sync flag']
  %s0 = inlined_call_operand.hbm [shape: f32[2,32,128], index: 0, kind: input, shape index: {}]
  %s1 = inlined_call_operand.hbm [shape: f32[128,128], index: 1, kind: input, shape index: {}]
  %s2 = inlined_call_operand.hbm [shape: f32[128,128], index: 2, kind: input, shape index: {}]
  %s3 = inlined_call_operand.hbm [shape: f32[128,128], index: 3, kind: input, shape index: {}]
  %s4 = inlined_call_operand.hbm [shape: f32[1,128], index: 4, kind: input, shape index: {}]
  %s5 = inlined_call_operand.hbm [shape: f32[1,128], index: 5, kind: input, shape index: {}]
  %s6 = inlined_call_operand.hbm [shape: f32[1,128], index: 6, kind: input, shape index: {}]
  %s7 = inlined_call_operand.hbm [shape: f32[32,16], index: 7, kind: input, shape index: {}]
  %s8 = inlined_call_operand.hbm [shape: f32[32,16], index: 8, kind: input, shape index: {}]
  %s9 = inlined_call_operand.hbm [shape: f32[2,4,32,32], index: 9, kind: output, shape index: {0}]
  %s10 = inlined_call_operand.hbm [shape: f32[2,4,32,32], index: 10, kind: output, shape index: {1}]
  %s11 = inlined_call_operand.hbm [shape: f32[2,4,32,32], index: 11, kind: output, shape index: {2}]
  %12 = xla_tuple %s9, %s10, %s11
  %s13 = sld [smem:[#allocation0]]
  $region121: #{tpu_custom_call.1} parent=0
    _
  %s15 = ssub.s32 1, %s13
  %s16 = scalar_select 0, %s15, %s13
  $region1: #{tpu_custom_call.1} parent=0
    #allocation2 [shape = 'u8[16384]{0}', space=vmem, size = 0x4000, scoped, tag = 'input window, operand 0']
    #allocation3 [shape = 's32[2]{0}', space=sflag, size = 0x8, scoped, tag = 'scoped memory for tpu_custom_call.1']
    #allocation4 [shape = 's32[2]{0}', space=sflag, size = 0x8, scoped, tag = 'scoped memory for tpu_custom_call.1']
    #allocation5 [shape = 'u8[65536]{0}', space=vmem, size = 0x10000, scoped, tag = 'input window, operand 1, single buffered']
    #allocation6 [shape = 's32[1]{0}', space=sflag, size = 0x4, scoped, tag = 'scoped memory for tpu_custom_call.1']
    #allocation7 [shape = 'u8[65536]{0}', space=vmem, size = 0x10000, scoped, tag = 'input window, operand 2, single buffered']
    #allocation8 [shape = 'u8[65536]{0}', space=vmem, size = 0x10000, scoped, tag = 'input window, operand 3, single buffered']
    #allocation9 [shape = 's32[1]{0}', space=sflag, size = 0x4, scoped, tag = 'scoped memory for tpu_custom_call.1']
    #allocation10 [shape = 'u8[512]{0}', space=vmem, size = 0x400, scoped, tag = 'input window, operand 4, single buffered']
    #allocation11 [shape = 'u8[512]{0}', space=vmem, size = 0x400, scoped, tag = 'input window, operand 5, single buffered']
    #allocation12 [shape = 's32[1]{0}', space=sflag, size = 0x4, scoped, tag = 'scoped memory for tpu_custom_call.1']
    #allocation13 [shape = 'u8[512]{0}', space=vmem, size = 0x400, scoped, tag = 'input window, operand 6, single buffered']
    #allocation14 [shape = 'u8[16384]{0}', space=vmem, size = 0x4000, scoped, tag = 'input window, operand 7']
    #allocation15 [shape = 's32[2]{0}', space=sflag, size = 0x8, scoped, tag = 'scoped memory for tpu_custom_call.1']
    #allocation16 [shape = 'u8[16384]{0}', space=vmem, size = 0x4000, scoped, tag = 'input window, operand 8']
    #allocation17 [shape = 'u8[65536]{0}', space=vmem, size = 0x10000, scoped, tag = 'output window, operand 0']
    #allocation18 [shape = 'u8[65536]{0}', space=vmem, size = 0x10000, scoped, tag = 'output window, operand 1']
    #allocation19 [shape = 's32[2]{0}', space=sflag, size = 0x8, scoped, tag = 'scoped memory for tpu_custom_call.1']
    #allocation20 [shape = 'u8[65536]{0}', space=vmem, size = 0x10000, scoped, tag = 'output window, operand 2']
    %17 = vsyncpa [#allocation3], 0
    %s18 = scalar_lea.sflag [#allocation3], 1
    %19 = vsyncpa %s18, 0
    %20 = vsyncpa [#allocation6], 0
    %21 = vsyncpa [#allocation9], 0
    %22 = vsyncpa [#allocation12], 0
    %23 = vsyncpa [#allocation15], 0
    %s24 = scalar_lea.sflag [#allocation15], 1
    %25 = vsyncpa %s24, 0
    %26 = vsyncpa [#allocation4], 0
    %s27 = scalar_lea.sflag [#allocation4], 1
    %28 = vsyncpa %s27, 0
    %29 = vsyncpa [#allocation19], 0
    %s30 = scalar_lea.sflag [#allocation19], 1
    %31 = vsyncpa %s30, 0
    loop: start=0, step=1, limit=6
    $region2: #{tpu_custom_call.1} parent=1 // loop_pre_header
      _
    $region3: #{tpu_custom_call.1} parent=1 // loop_header
      %s33 = sphi 0, %s37
      %p34 = scmp.ge.s32.totalorder %s33, 6
      %s40 = sphi 0, %s52
      %s41 = sphi 0, %s48
      %s42 = sphi 0, %s40
      %s43 = sphi 0, %s41
      %s44 = sphi 0, %s42
      %s45 = sphi 0, %s43
      %s57 = sphi 0, %s59
      %s60 = sphi 0, %s57
      %s61 = sphi 0, %s60
      %s77 = sphi 0, %s61
      %s81 = sphi 0, %s81
      %s83 = sphi 0, %s81
      %s84 = sphi 0, %s83
      %s98 = sphi 0, %s84
      %s102 = sphi 0, %s102
      %s104 = sphi 0, %s102
      %s105 = sphi 0, %s104
      %s119 = sphi 0, %s105
      %s123 = sphi 0, %s123
      %s125 = sphi 0, %s123
      %s126 = sphi 0, %s125
      %s140 = sphi 0, %s126
      %s144 = sphi 0, %s144
      %s146 = sphi 0, %s144
      %s147 = sphi 0, %s146
      %s161 = sphi 0, %s147
      %s165 = sphi 0, %s165
      %s167 = sphi 0, %s165
      %s168 = sphi 0, %s167
      %s182 = sphi 0, %s168
      %s186 = sphi 0, %s186
      %s188 = sphi 0, %s186
      %s189 = sphi 0, %s188
      %s203 = sphi 0, %s189
      %s209 = sphi 0, %s211
      %s212 = sphi 0, %s209
      %s213 = sphi 0, %s212
      %s229 = sphi 0, %s213
      %s235 = sphi 0, %s237
      %s238 = sphi 0, %s235
      %s239 = sphi 0, %s238
      %s255 = sphi 0, %s239
      %s263 = sphi 0, %s265
      %s266 = sphi 0, %s263
      %s267 = sphi 0, %s266
      %s283 = sphi 0, %s267
      %s291 = sphi 0, %s293
      %s294 = sphi 0, %s291
      %s295 = sphi 0, %s294
      %s311 = sphi 0, %s295
      %s319 = sphi 0, %s321
      %s322 = sphi 0, %s319
      %s323 = sphi 0, %s322
      %s339 = sphi 0, %s323
    $region4: #{tpu_custom_call.1} parent=1 // loop_header_branch
      %36 = sbr.rel (%p34) target = $region8
    $region5: #{tpu_custom_call.1} parent=1 // loop_body
      %s38 = ssub.s32 %s33, 1
      %s39 = ssub.s32 %s33, 2
      %s46 = sadd.s32 1, %s41
      %p47 = scmp.ge.s32.totalorder %s46, 2
      %s48 = scalar_select %p47, 0, %s46
      %s49 = sadd.s32 1, %s40
      %s50 = scalar_select %p47, %s49, %s40
      %p51 = scmp.ge.s32.totalorder %s50, 2
      %s52 = scalar_select %p51, 0, %s50
      %s53 = ssub.s32 %s40, %s52
      %s54 = ssub.s32 %s41, %s48
      %s55 = sor.u32 %s53, %s54
      %p56 = scmp.eq.s32.totalorder %s55, 0
      %s58 = sadd.s32 %s57, 1
      %s59 = scalar_select %p56, %s57, %s58
      %p62 = pneg %p56
      %p63 = scmp.eq.s32.totalorder %s33, 3
      %p64 = por %p62, %p63
      %p65 = scmp.ne.s32.totalorder %s57, %s60
      %p66 = scmp.eq.s32.totalorder %s33, 0
      %p67 = por %p65, %p66
      %p68 = scmp.ne.s32.totalorder %s57, %s60
      %p69 = scmp.eq.s32.totalorder %s38, 3
      %p70 = por %p68, %p69
      %p71 = scmp.ne.s32.totalorder %s60, %s61
      %p72 = scmp.eq.s32.totalorder %s38, 0
      %p73 = por %p71, %p72
      %p74 = scmp.ne.s32.totalorder %s60, %s61
      %p75 = scmp.eq.s32.totalorder %s39, 3
      %p76 = por %p74, %p75
      %p78 = scmp.ne.s32.totalorder %s61, %s77
      %p79 = scmp.eq.s32.totalorder %s39, 0
      %p80 = por %p78, %p79
      %s82 = sadd.s32 %s81, 1
      %p85 = scmp.eq.s32.totalorder %s33, 3
      %p86 = scmp.ne.s32.totalorder %s81, %s83
      %p87 = scmp.eq.s32.totalorder %s33, 0
      %p88 = por %p86, %p87
      %p89 = scmp.ne.s32.totalorder %s81, %s83
      %p90 = scmp.eq.s32.totalorder %s38, 3
      %p91 = por %p89, %p90
      %p92 = scmp.ne.s32.totalorder %s83, %s84
      %p93 = scmp.eq.s32.totalorder %s38, 0
      %p94 = por %p92, %p93
      %p95 = scmp.ne.s32.totalorder %s83, %s84
      %p96 = scmp.eq.s32.totalorder %s39, 3
      %p97 = por %p95, %p96
      %p99 = scmp.ne.s32.totalorder %s84, %s98
      %p100 = scmp.eq.s32.totalorder %s39, 0
      %p101 = por %p99, %p100
      %s103 = sadd.s32 %s102, 1
      %p106 = scmp.eq.s32.totalorder %s33, 3
      %p107 = scmp.ne.s32.totalorder %s102, %s104
      %p108 = scmp.eq.s32.totalorder %s33, 0
      %p109 = por %p107, %p108
      %p110 = scmp.ne.s32.totalorder %s102, %s104
      %p111 = scmp.eq.s32.totalorder %s38, 3
      %p112 = por %p110, %p111
      %p113 = scmp.ne.s32.totalorder %s104, %s105
      %p114 = scmp.eq.s32.totalorder %s38, 0
      %p115 = por %p113, %p114
      %p116 = scmp.ne.s32.totalorder %s104, %s105
      %p117 = scmp.eq.s32.totalorder %s39, 3
      %p118 = por %p116, %p117
      %p120 = scmp.ne.s32.totalorder %s105, %s119
      %p121 = scmp.eq.s32.totalorder %s39, 0
      %p122 = por %p120, %p121
      %s124 = sadd.s32 %s123, 1
      %p127 = scmp.eq.s32.totalorder %s33, 3
      %p128 = scmp.ne.s32.totalorder %s123, %s125
      %p129 = scmp.eq.s32.totalorder %s33, 0
      %p130 = por %p128, %p129
      %p131 = scmp.ne.s32.totalorder %s123, %s125
      %p132 = scmp.eq.s32.totalorder %s38, 3
      %p133 = por %p131, %p132
      %p134 = scmp.ne.s32.totalorder %s125, %s126
      %p135 = scmp.eq.s32.totalorder %s38, 0
      %p136 = por %p134, %p135
      %p137 = scmp.ne.s32.totalorder %s125, %s126
      %p138 = scmp.eq.s32.totalorder %s39, 3
      %p139 = por %p137, %p138
      %p141 = scmp.ne.s32.totalorder %s126, %s140
      %p142 = scmp.eq.s32.totalorder %s39, 0
      %p143 = por %p141, %p142
      %s145 = sadd.s32 %s144, 1
      %p148 = scmp.eq.s32.totalorder %s33, 3
      %p149 = scmp.ne.s32.totalorder %s144, %s146
      %p150 = scmp.eq.s32.totalorder %s33, 0
      %p151 = por %p149, %p150
      %p152 = scmp.ne.s32.totalorder %s144, %s146
      %p153 = scmp.eq.s32.totalorder %s38, 3
      %p154 = por %p152, %p153
      %p155 = scmp.ne.s32.totalorder %s146, %s147
      %p156 = scmp.eq.s32.totalorder %s38, 0
      %p157 = por %p155, %p156
      %p158 = scmp.ne.s32.totalorder %s146, %s147
      %p159 = scmp.eq.s32.totalorder %s39, 3
      %p160 = por %p158, %p159
      %p162 = scmp.ne.s32.totalorder %s147, %s161
      %p163 = scmp.eq.s32.totalorder %s39, 0
      %p164 = por %p162, %p163
      %s166 = sadd.s32 %s165, 1
      %p169 = scmp.eq.s32.totalorder %s33, 3
      %p170 = scmp.ne.s32.totalorder %s165, %s167
      %p171 = scmp.eq.s32.totalorder %s33, 0
      %p172 = por %p170, %p171
      %p173 = scmp.ne.s32.totalorder %s165, %s167
      %p174 = scmp.eq.s32.totalorder %s38, 3
      %p175 = por %p173, %p174
      %p176 = scmp.ne.s32.totalorder %s167, %s168
      %p177 = scmp.eq.s32.totalorder %s38, 0
      %p178 = por %p176, %p177
      %p179 = scmp.ne.s32.totalorder %s167, %s168
      %p180 = scmp.eq.s32.totalorder %s39, 3
      %p181 = por %p179, %p180
      %p183 = scmp.ne.s32.totalorder %s168, %s182
      %p184 = scmp.eq.s32.totalorder %s39, 0
      %p185 = por %p183, %p184
      %s187 = sadd.s32 %s186, 1
      %p190 = scmp.eq.s32.totalorder %s33, 3
      %p191 = scmp.ne.s32.totalorder %s186, %s188
      %p192 = scmp.eq.s32.totalorder %s33, 0
      %p193 = por %p191, %p192
      %p194 = scmp.ne.s32.totalorder %s186, %s188
      %p195 = scmp.eq.s32.totalorder %s38, 3
      %p196 = por %p194, %p195
      %p197 = scmp.ne.s32.totalorder %s188, %s189
      %p198 = scmp.eq.s32.totalorder %s38, 0
      %p199 = por %p197, %p198
      %p200 = scmp.ne.s32.totalorder %s188, %s189
      %p201 = scmp.eq.s32.totalorder %s39, 3
      %p202 = por %p200, %p201
      %p204 = scmp.ne.s32.totalorder %s189, %s203
      %p205 = scmp.eq.s32.totalorder %s39, 0
      %p206 = por %p204, %p205
      %s207 = ssub.s32 %s41, %s48
      %p208 = scmp.eq.s32.totalorder %s207, 0
      %s210 = sadd.s32 %s209, 1
      %s211 = scalar_select %p208, %s209, %s210
      %p214 = pneg %p208
      %p215 = scmp.eq.s32.totalorder %s33, 3
      %p216 = por %p214, %p215
      %p217 = scmp.ne.s32.totalorder %s209, %s212
      %p218 = scmp.eq.s32.totalorder %s33, 0
      %p219 = por %p217, %p218
      %p220 = scmp.ne.s32.totalorder %s209, %s212
      %p221 = scmp.eq.s32.totalorder %s38, 3
      %p222 = por %p220, %p221
      %p223 = scmp.ne.s32.totalorder %s212, %s213
      %p224 = scmp.eq.s32.totalorder %s38, 0
      %p225 = por %p223, %p224
      %p226 = scmp.ne.s32.totalorder %s212, %s213
      %p227 = scmp.eq.s32.totalorder %s39, 3
      %p228 = por %p226, %p227
      %p230 = scmp.ne.s32.totalorder %s213, %s229
      %p231 = scmp.eq.s32.totalorder %s39, 0
      %p232 = por %p230, %p231
      %s233 = ssub.s32 %s41, %s48
      %p234 = scmp.eq.s32.totalorder %s233, 0
      %s236 = sadd.s32 %s235, 1
      %s237 = scalar_select %p234, %s235, %s236
      %p240 = pneg %p234
      %p241 = scmp.eq.s32.totalorder %s33, 3
      %p242 = por %p240, %p241
      %p243 = scmp.ne.s32.totalorder %s235, %s238
      %p244 = scmp.eq.s32.totalorder %s33, 0
      %p245 = por %p243, %p244
      %p246 = scmp.ne.s32.totalorder %s235, %s238
      %p247 = scmp.eq.s32.totalorder %s38, 3
      %p248 = por %p246, %p247
      %p249 = scmp.ne.s32.totalorder %s238, %s239
      %p250 = scmp.eq.s32.totalorder %s38, 0
      %p251 = por %p249, %p250
      %p252 = scmp.ne.s32.totalorder %s238, %s239
      %p253 = scmp.eq.s32.totalorder %s39, 3
      %p254 = por %p252, %p253
      %p256 = scmp.ne.s32.totalorder %s239, %s255
      %p257 = scmp.eq.s32.totalorder %s39, 0
      %p258 = por %p256, %p257
      %s259 = ssub.s32 %s40, %s52
      %s260 = ssub.s32 %s41, %s48
      %s261 = sor.u32 %s259, %s260
      %p262 = scmp.eq.s32.totalorder %s261, 0
      %s264 = sadd.s32 %s263, 1
      %s265 = scalar_select %p262, %s263, %s264
      %p268 = pneg %p262
      %p269 = scmp.eq.s32.totalorder %s33, 3
      %p270 = por %p268, %p269
      %p271 = scmp.ne.s32.totalorder %s263, %s266
      %p272 = scmp.eq.s32.totalorder %s33, 0
      %p273 = por %p271, %p272
      %p274 = scmp.ne.s32.totalorder %s263, %s266
      %p275 = scmp.eq.s32.totalorder %s38, 3
      %p276 = por %p274, %p275
      %p277 = scmp.ne.s32.totalorder %s266, %s267
      %p278 = scmp.eq.s32.totalorder %s38, 0
      %p279 = por %p277, %p278
      %p280 = scmp.ne.s32.totalorder %s266, %s267
      %p281 = scmp.eq.s32.totalorder %s39, 3
      %p282 = por %p280, %p281
      %p284 = scmp.ne.s32.totalorder %s267, %s283
      %p285 = scmp.eq.s32.totalorder %s39, 0
      %p286 = por %p284, %p285
      %s287 = ssub.s32 %s40, %s52
      %s288 = ssub.s32 %s41, %s48
      %s289 = sor.u32 %s287, %s288
      %p290 = scmp.eq.s32.totalorder %s289, 0
      %s292 = sadd.s32 %s291, 1
      %s293 = scalar_select %p290, %s291, %s292
      %p296 = pneg %p290
      %p297 = scmp.eq.s32.totalorder %s33, 3
      %p298 = por %p296, %p297
      %p299 = scmp.ne.s32.totalorder %s291, %s294
      %p300 = scmp.eq.s32.totalorder %s33, 0
      %p301 = por %p299, %p300
      %p302 = scmp.ne.s32.totalorder %s291, %s294
      %p303 = scmp.eq.s32.totalorder %s38, 3
      %p304 = por %p302, %p303
      %p305 = scmp.ne.s32.totalorder %s294, %s295
      %p306 = scmp.eq.s32.totalorder %s38, 0
      %p307 = por %p305, %p306
      %p308 = scmp.ne.s32.totalorder %s294, %s295
      %p309 = scmp.eq.s32.totalorder %s39, 3
      %p310 = por %p308, %p309
      %p312 = scmp.ne.s32.totalorder %s295, %s311
      %p313 = scmp.eq.s32.totalorder %s39, 0
      %p314 = por %p312, %p313
      %s315 = ssub.s32 %s40, %s52
      %s316 = ssub.s32 %s41, %s48
      %s317 = sor.u32 %s315, %s316
      %p318 = scmp.eq.s32.totalorder %s317, 0
      %s320 = sadd.s32 %s319, 1
      %s321 = scalar_select %p318, %s319, %s320
      %p324 = pneg %p318
      %p325 = scmp.eq.s32.totalorder %s33, 3
      %p326 = por %p324, %p325
      %p327 = scmp.ne.s32.totalorder %s319, %s322
      %p328 = scmp.eq.s32.totalorder %s33, 0
      %p329 = por %p327, %p328
      %p330 = scmp.ne.s32.totalorder %s319, %s322
      %p331 = scmp.eq.s32.totalorder %s38, 3
      %p332 = por %p330, %p331
      %p333 = scmp.ne.s32.totalorder %s322, %s323
      %p334 = scmp.eq.s32.totalorder %s38, 0
      %p335 = por %p333, %p334
      %p336 = scmp.ne.s32.totalorder %s322, %s323
      %p337 = scmp.eq.s32.totalorder %s39, 3
      %p338 = por %p336, %p337
      %p340 = scmp.ne.s32.totalorder %s323, %s339
      %p341 = scmp.eq.s32.totalorder %s39, 0
      %p342 = por %p340, %p341
      %p343 = scmp.le.s32.totalorder 1, %s33
      %p344 = scmp.lt.s32.totalorder %s33, 5
      %p345 = pnand %p343, %p344
      %p346 = pneg %p345
      // Predicated region
      $region9: #{tpu_custom_call.1} parent=5 // pred_check
        _
      $region10: #{tpu_custom_call.1} parent=5 // pred_check_branch
        %348 = sbr.rel (%p345) target = $region12
      $region11: #{tpu_custom_call.1} parent=5 // pred_region
        %s349 = ssub.s32 %s33, 1
        // Predicated region
        $region13: #{tpu_custom_call.1} parent=11 // pred_check
          %p350 = pneg %p94
        $region14: #{tpu_custom_call.1} parent=11 // pred_check_branch
          %352 = sbr.rel (%p350) target = $region16
        $region15: #{tpu_custom_call.1} parent=11 // pred_region
          %s354 = ssub.s32 2048, 2048
          %355 = vsyncadd [#allocation6], %s354
          %s356 = sshll.u32 [#allocation5], 4
          %s357 = int_to_ptr.vmem [resolvable:$true] %s356
          %362 = dma.hbm_to_vmem [thread:$0]  %s1, 2048, %s357, [#allocation6], 128, 128, 8
        $region16: #{tpu_custom_call.1} parent=11 // pred_fallthru
          _
        // Predicated region
        $region17: #{tpu_custom_call.1} parent=11 // pred_check
          %p363 = pneg %p115
        $region18: #{tpu_custom_call.1} parent=11 // pred_check_branch
          %365 = sbr.rel (%p363) target = $region20
        $region19: #{tpu_custom_call.1} parent=11 // pred_region
          %s367 = ssub.s32 2048, 2048
          %368 = vsyncadd [#allocation6], %s367
          %s369 = sshll.u32 [#allocation7], 4
          %s370 = int_to_ptr.vmem [resolvable:$true] %s369
          %375 = dma.hbm_to_vmem [thread:$0]  %s2, 2048, %s370, [#allocation6], 128, 128, 8
        $region20: #{tpu_custom_call.1} parent=11 // pred_fallthru
          _
        // Predicated region
        $region21: #{tpu_custom_call.1} parent=11 // pred_check
          %p376 = pneg %p136
        $region22: #{tpu_custom_call.1} parent=11 // pred_check_branch
          %378 = sbr.rel (%p376) target = $region24
        $region23: #{tpu_custom_call.1} parent=11 // pred_region
          %s380 = ssub.s32 2048, 2048
          %381 = vsyncadd [#allocation9], %s380
          %s382 = sshll.u32 [#allocation8], 4
          %s383 = int_to_ptr.vmem [resolvable:$true] %s382
          %388 = dma.hbm_to_vmem [thread:$0]  %s3, 2048, %s383, [#allocation9], 128, 128, 8
        $region24: #{tpu_custom_call.1} parent=11 // pred_fallthru
          _
        // Predicated region
        $region25: #{tpu_custom_call.1} parent=11 // pred_check
          %p389 = pneg %p157
        $region26: #{tpu_custom_call.1} parent=11 // pred_check_branch
          %391 = sbr.rel (%p389) target = $region28
        $region27: #{tpu_custom_call.1} parent=11 // pred_region
          %s393 = ssub.s32 16, 16
          %394 = vsyncadd [#allocation9], %s393
          %s396 = sshll.u32 [#allocation10], 4
          %s397 = int_to_ptr.vmem [resolvable:$true] %s396
          %399 = dma.hbm_to_vmem [thread:$0]  %s4, 16, %s397, [#allocation9]
        $region28: #{tpu_custom_call.1} parent=11 // pred_fallthru
          _
        // Predicated region
        $region29: #{tpu_custom_call.1} parent=11 // pred_check
          %p400 = pneg %p178
        $region30: #{tpu_custom_call.1} parent=11 // pred_check_branch
          %402 = sbr.rel (%p400) target = $region32
        $region31: #{tpu_custom_call.1} parent=11 // pred_region
          %s404 = ssub.s32 16, 16
          %405 = vsyncadd [#allocation12], %s404
          %s407 = sshll.u32 [#allocation11], 4
          %s408 = int_to_ptr.vmem [resolvable:$true] %s407
          %410 = dma.hbm_to_vmem [thread:$0]  %s5, 16, %s408, [#allocation12]
        $region32: #{tpu_custom_call.1} parent=11 // pred_fallthru
          _
        // Predicated region
        $region33: #{tpu_custom_call.1} parent=11 // pred_check
          %p411 = pneg %p199
        $region34: #{tpu_custom_call.1} parent=11 // pred_check_branch
          %413 = sbr.rel (%p411) target = $region36
        $region35: #{tpu_custom_call.1} parent=11 // pred_region
          %s415 = ssub.s32 16, 16
          %416 = vsyncadd [#allocation12], %s415
          %s418 = sshll.u32 [#allocation13], 4
          %s419 = int_to_ptr.vmem [resolvable:$true] %s418
          %421 = dma.hbm_to_vmem [thread:$0]  %s6, 16, %s419, [#allocation12]
        $region36: #{tpu_custom_call.1} parent=11 // pred_fallthru
          _
      $region12: #{tpu_custom_call.1} parent=5 // pred_fallthru
        _
      %p422 = scmp.lt.s32.totalorder %s33, 4
      // Predicated region
      $region37: #{tpu_custom_call.1} parent=5 // pred_check
        %p423 = pneg %p422
      $region38: #{tpu_custom_call.1} parent=5 // pred_check_branch
        %425 = sbr.rel (%p423) target = $region40
      $region39: #{tpu_custom_call.1} parent=5 // pred_region
        // Predicated region
        $region41: #{tpu_custom_call.1} parent=39 // pred_check
          %p426 = pneg %p67
        $region42: #{tpu_custom_call.1} parent=39 // pred_check_branch
          %428 = sbr.rel (%p426) target = $region44
        $region43: #{tpu_custom_call.1} parent=39 // pred_region
          %s429 = sand.u32 %s57, 1
          %s430 = scalar_lea.sflag [#allocation3], %s429
          %s431 = sand.u32 %s57, 1
          %s432 = smul.addr %s431, 16
          %s433 = scalar_lea.vmem [#allocation2], %s432
          %s434 = smul.u32 2, %s41
          %s436 = ssub.s32 256, 256
          %437 = vsyncadd %s430, %s436
          %s438 = smul.addr %s40, 4
          %s439 = sadd.s32 %s434, %s438
          %s440 = smul.addr %s439, 128
          %s441 = scalar_lea.hbm %s0, %s440
          %s442 = sshll.u32 %s433, 4
          %s443 = int_to_ptr.vmem [resolvable:$true] %s442
          %448 = dma.hbm_to_vmem [thread:$0]  %s441, 256, %s443, %s430, 128, 128, 8
        $region44: #{tpu_custom_call.1} parent=39 // pred_fallthru
          _
        // Predicated region
        $region45: #{tpu_custom_call.1} parent=39 // pred_check
          %p449 = pneg %p219
        $region46: #{tpu_custom_call.1} parent=39 // pred_check_branch
          %451 = sbr.rel (%p449) target = $region48
        $region47: #{tpu_custom_call.1} parent=39 // pred_region
          %s452 = sand.u32 %s33, 1
          %s453 = scalar_lea.sflag [#allocation15], %s452
          %s454 = sand.u32 %s209, 1
          %s455 = smul.addr %s454, 16
          %s456 = scalar_lea.vmem [#allocation14], %s455
          %s457 = smul.u32 2, %s41
          %s459 = ssub.s32 256, 256
          %460 = vsyncadd %s453, %s459
          %s461 = smul.addr %s457, 128
          %s462 = scalar_lea.hbm %s7, %s461
          %s463 = sshll.u32 %s456, 4
          %s464 = int_to_ptr.vmem [resolvable:$true] %s463
          %469 = dma.hbm_to_vmem [thread:$0]  %s462, 256, %s464, %s453, 128, 128, 8
        $region48: #{tpu_custom_call.1} parent=39 // pred_fallthru
          _
        // Predicated region
        $region49: #{tpu_custom_call.1} parent=39 // pred_check
          %p470 = pneg %p245
        $region50: #{tpu_custom_call.1} parent=39 // pred_check_branch
          %472 = sbr.rel (%p470) target = $region52
        $region51: #{tpu_custom_call.1} parent=39 // pred_region
          %s473 = sand.u32 %s33, 1
          %s474 = scalar_lea.sflag [#allocation15], %s473
          %s475 = sand.u32 %s235, 1
          %s476 = smul.addr %s475, 16
          %s477 = scalar_lea.vmem [#allocation16], %s476
          %s478 = smul.u32 2, %s41
          %s480 = ssub.s32 256, 256
          %481 = vsyncadd %s474, %s480
          %s482 = smul.addr %s478, 128
          %s483 = scalar_lea.hbm %s8, %s482
          %s484 = sshll.u32 %s477, 4
          %s485 = int_to_ptr.vmem [resolvable:$true] %s484
          %490 = dma.hbm_to_vmem [thread:$0]  %s483, 256, %s485, %s474, 128, 128, 8
        $region52: #{tpu_custom_call.1} parent=39 // pred_fallthru
          _
      $region40: #{tpu_custom_call.1} parent=5 // pred_fallthru
        _
      %p491 = scmp.le.s32.totalorder 1, %s33
      %p492 = scmp.lt.s32.totalorder %s33, 5
      %p493 = pnand %p491, %p492
      %p494 = pneg %p493
      // Predicated region
      $region53: #{tpu_custom_call.1} parent=5 // pred_check
        _
      $region54: #{tpu_custom_call.1} parent=5 // pred_check_branch
        %496 = sbr.rel (%p493) target = $region56
      $region55: #{tpu_custom_call.1} parent=5 // pred_region
        %s497 = ssub.s32 %s33, 1
        %s498 = sand.u32 %s60, 1
        %s499 = scalar_lea.sflag [#allocation3], %s498
        %s500 = sand.u32 %s60, 1
        %s501 = smul.addr %s500, 16
        %s502 = scalar_lea.vmem [#allocation2], %s501
        // Predicated region
        $region57: #{tpu_custom_call.1} parent=55 // pred_check
          %p503 = pneg %p73
        $region58: #{tpu_custom_call.1} parent=55 // pred_check_branch
          %505 = sbr.rel (%p503) target = $region60
        $region59: #{tpu_custom_call.1} parent=55 // pred_region
          %506 = dma.done %s499, 256
        $region60: #{tpu_custom_call.1} parent=55 // pred_fallthru
          _
        // Predicated region
        $region61: #{tpu_custom_call.1} parent=55 // pred_check
          %p507 = pneg %p94
        $region62: #{tpu_custom_call.1} parent=55 // pred_check_branch
          %509 = sbr.rel (%p507) target = $region64
        $region63: #{tpu_custom_call.1} parent=55 // pred_region
          %510 = dma.done [#allocation6], 2048
        $region64: #{tpu_custom_call.1} parent=55 // pred_fallthru
          _
        // Predicated region
        $region65: #{tpu_custom_call.1} parent=55 // pred_check
          %p511 = pneg %p115
        $region66: #{tpu_custom_call.1} parent=55 // pred_check_branch
          %513 = sbr.rel (%p511) target = $region68
        $region67: #{tpu_custom_call.1} parent=55 // pred_region
          %514 = dma.done [#allocation6], 2048
        $region68: #{tpu_custom_call.1} parent=55 // pred_fallthru
          _
        // Predicated region
        $region69: #{tpu_custom_call.1} parent=55 // pred_check
          %p515 = pneg %p136
        $region70: #{tpu_custom_call.1} parent=55 // pred_check_branch
          %517 = sbr.rel (%p515) target = $region72
        $region71: #{tpu_custom_call.1} parent=55 // pred_region
          %518 = dma.done [#allocation9], 2048
        $region72: #{tpu_custom_call.1} parent=55 // pred_fallthru
          _
        // Predicated region
        $region73: #{tpu_custom_call.1} parent=55 // pred_check
          %p519 = pneg %p157
        $region74: #{tpu_custom_call.1} parent=55 // pred_check_branch
          %521 = sbr.rel (%p519) target = $region76
        $region75: #{tpu_custom_call.1} parent=55 // pred_region
          %522 = dma.done [#allocation9], 16
        $region76: #{tpu_custom_call.1} parent=55 // pred_fallthru
          _
        // Predicated region
        $region77: #{tpu_custom_call.1} parent=55 // pred_check
          %p523 = pneg %p178
        $region78: #{tpu_custom_call.1} parent=55 // pred_check_branch
          %525 = sbr.rel (%p523) target = $region80
        $region79: #{tpu_custom_call.1} parent=55 // pred_region
          %526 = dma.done [#allocation12], 16
        $region80: #{tpu_custom_call.1} parent=55 // pred_fallthru
          _
        // Predicated region
        $region81: #{tpu_custom_call.1} parent=55 // pred_check
          %p527 = pneg %p199
        $region82: #{tpu_custom_call.1} parent=55 // pred_check_branch
          %529 = sbr.rel (%p527) target = $region84
        $region83: #{tpu_custom_call.1} parent=55 // pred_region
          %530 = dma.done [#allocation12], 16
        $region84: #{tpu_custom_call.1} parent=55 // pred_fallthru
          _
        %s531 = sand.u32 %s38, 1
        %s532 = scalar_lea.sflag [#allocation15], %s531
        %s533 = sand.u32 %s212, 1
        %s534 = smul.addr %s533, 16
        %s535 = scalar_lea.vmem [#allocation14], %s534
        // Predicated region
        $region85: #{tpu_custom_call.1} parent=55 // pred_check
          %p536 = pneg %p225
        $region86: #{tpu_custom_call.1} parent=55 // pred_check_branch
          %538 = sbr.rel (%p536) target = $region88
        $region87: #{tpu_custom_call.1} parent=55 // pred_region
          %539 = dma.done %s532, 256
        $region88: #{tpu_custom_call.1} parent=55 // pred_fallthru
          _
        %s540 = sand.u32 %s38, 1
        %s541 = scalar_lea.sflag [#allocation15], %s540
        %s542 = sand.u32 %s238, 1
        %s543 = smul.addr %s542, 16
        %s544 = scalar_lea.vmem [#allocation16], %s543
        // Predicated region
        $region89: #{tpu_custom_call.1} parent=55 // pred_check
          %p545 = pneg %p251
        $region90: #{tpu_custom_call.1} parent=55 // pred_check_branch
          %547 = sbr.rel (%p545) target = $region92
        $region91: #{tpu_custom_call.1} parent=55 // pred_region
          %548 = dma.done %s541, 256
        $region92: #{tpu_custom_call.1} parent=55 // pred_fallthru
          _
        %s549 = sand.u32 %s60, 1
        %s550 = scalar_lea.sflag [#allocation3], %s549
        %s551 = sand.u32 %s60, 1
        %s552 = smul.addr %s551, 16
        %s553 = scalar_lea.vmem [#allocation2], %s552
        %p554 = pneg %p73
        %p555 = pneg %p70
        %p556 = pneg %p94
        %p557 = pneg %p91
        %p558 = pneg %p115
        %p559 = pneg %p112
        %p560 = pneg %p136
        %p561 = pneg %p133
        %p562 = pneg %p157
        %p563 = pneg %p154
        %p564 = pneg %p178
        %p565 = pneg %p175
        %p566 = pneg %p199
        %p567 = pneg %p196
        %s568 = sand.u32 %s38, 1
        %s569 = scalar_lea.sflag [#allocation15], %s568
        %s570 = sand.u32 %s212, 1
        %s571 = smul.addr %s570, 16
        %s572 = scalar_lea.vmem [#allocation14], %s571
        %p573 = pneg %p225
        %p574 = pneg %p222
        %s575 = sand.u32 %s38, 1
        %s576 = scalar_lea.sflag [#allocation15], %s575
        %s577 = sand.u32 %s238, 1
        %s578 = smul.addr %s577, 16
        %s579 = scalar_lea.vmem [#allocation16], %s578
        %p580 = pneg %p251
        %p581 = pneg %p248
        %p582 = pneg %p279
        %p583 = pneg %p276
        %s584 = sand.u32 %s266, 1
        %s585 = scalar_lea.sflag [#allocation4], %s584
        %s586 = sand.u32 %s266, 1
        %s587 = smul.addr %s586, 64
        %s588 = scalar_lea.vmem [#allocation17], %s587
        %p589 = pneg %p307
        %p590 = pneg %p304
        %s591 = sand.u32 %s38, 1
        %s592 = scalar_lea.sflag [#allocation19], %s591
        %s593 = sand.u32 %s294, 1
        %s594 = smul.addr %s593, 64
        %s595 = scalar_lea.vmem [#allocation18], %s594
        %p596 = pneg %p335
        %p597 = pneg %p332
        %s598 = sand.u32 %s38, 1
        %s599 = scalar_lea.sflag [#allocation19], %s598
        %s600 = sand.u32 %s322, 1
        %s601 = smul.addr %s600, 64
        %s602 = scalar_lea.vmem [#allocation20], %s601
        %s603 = smul.u32 2, %s43
        %s604 = smul.u32 2, %s43
        %s605 = smul.u32 2, %s43
        %s606 = smul.u32 2, %s43
        %s607 = smul.u32 2, %s43
        %s608 = smul.u32 2, %s43
        %v609 = vld [vmem:[%s502] sm:$0xff]
        %v610 = vld [vmem:[%s502 + $0x8] sm:$0xff]
        %v611 = vld [vmem:[%s535] sm:$0xff]
        %v612 = vld [vmem:[%s535 + $0x8] sm:$0xff]
        %v613 = vld [vmem:[%s544] sm:$0xff]
        %v614 = vld [vmem:[%s544 + $0x8] sm:$0xff]
        %v615 = vld [vmem:[#allocation5] sm:$0xff]
        %v616 = vld [vmem:[#allocation5 + $0x8] sm:$0xff]
        %v617 = vld [vmem:[#allocation5 + $0x10] sm:$0xff]
        %v618 = vld [vmem:[#allocation5 + $0x18] sm:$0xff]
        %v619 = vld [vmem:[#allocation5 + $0x20] sm:$0xff]
        %v620 = vld [vmem:[#allocation5 + $0x28] sm:$0xff]
        %v621 = vld [vmem:[#allocation5 + $0x30] sm:$0xff]
        %v622 = vld [vmem:[#allocation5 + $0x38] sm:$0xff]
        %v623 = vld [vmem:[#allocation5 + $0x40] sm:$0xff]
        %v624 = vld [vmem:[#allocation5 + $0x48] sm:$0xff]
        %v625 = vld [vmem:[#allocation5 + $0x50] sm:$0xff]
        %v626 = vld [vmem:[#allocation5 + $0x58] sm:$0xff]
        %v627 = vld [vmem:[#allocation5 + $0x60] sm:$0xff]
        %v628 = vld [vmem:[#allocation5 + $0x68] sm:$0xff]
        %v629 = vld [vmem:[#allocation5 + $0x70] sm:$0xff]
        %v630 = vld [vmem:[#allocation5 + $0x78] sm:$0xff]
        %v631 = vld [vmem:[#allocation10] sm:$0x1]
        %v633 = vlaneseq
        %v634 = vshrl.u32 %v633, 7
        %v635 = vsub.s32 0, %v634
        %v636 = vrot.slane %v631, %v635
        %638 = vmatprep.subr.mxu0 0.0
        %639 = vmatpush1.msra.mxu0 %v615
        %640 = vmatprep.subr.mxu0 0.0
        %641 = vmatpush1.msra.mxu0 %v616
        %642 = vmatprep.subr.mxu0 0.0
        %643 = vmatpush1.msra.mxu0 %v617
        %644 = vmatprep.subr.mxu0 0.0
        %645 = vmatpush1.msra.mxu0 %v618
        %646 = vmatprep.subr.mxu0 0.0
        %647 = vmatpush1.msra.mxu0 %v619
        %648 = vmatprep.subr.mxu0 0.0
        %649 = vmatpush1.msra.mxu0 %v620
        %650 = vmatprep.subr.mxu0 0.0
        %651 = vmatpush1.msra.mxu0 %v621
        %652 = vmatprep.subr.mxu0 0.0
        %653 = vmatpush1.msra.mxu0 %v622
        %654 = vmatprep.subr.mxu0 0.0
        %655 = vmatpush1.msra.mxu0 %v623
        %656 = vmatprep.subr.mxu0 0.0
        %657 = vmatpush1.msra.mxu0 %v624
        %658 = vmatprep.subr.mxu0 0.0
        %659 = vmatpush1.msra.mxu0 %v625
        %660 = vmatprep.subr.mxu0 0.0
        %661 = vmatpush1.msra.mxu0 %v626
        %662 = vmatprep.subr.mxu0 0.0
        %663 = vmatpush1.msra.mxu0 %v627
        %664 = vmatprep.subr.mxu0 0.0
        %665 = vmatpush1.msra.mxu0 %v628
        %666 = vmatprep.subr.mxu0 0.0
        %667 = vmatpush1.msra.mxu0 %v629
        %668 = vmatprep.subr.mxu0 0.0
        %669 = vmatpush1.msra.mxu0 %v630
        %670 = vmatprep.subr.mxu0 0.0
        %671 = vmatpush1.msra.mxu0 0.0
        %672 = vmatprep.subr.mxu0 0.0
        %673 = vmatpush1.msra.mxu0 0.0
        %674 = vmatprep.subr.mxu0 0.0
        %675 = vmatpush1.msra.mxu0 0.0
        %676 = vmatprep.subr.mxu0 0.0
        %677 = vmatpush1.msra.mxu0 0.0
        %678 = vmatprep.subr.mxu0 0.0
        %679 = vmatpush1.msra.mxu0 0.0
        %680 = vmatprep.subr.mxu0 0.0
        %681 = vmatpush1.msra.mxu0 0.0
        %682 = vmatprep.subr.mxu0 0.0
        %683 = vmatpush1.msra.mxu0 0.0
        %684 = vmatprep.subr.mxu0 0.0
        %685 = vmatpush1.msra.mxu0 0.0
        %686 = vmatprep.subr.mxu0 0.0
        %687 = vmatpush1.msra.mxu0 0.0
        %688 = vmatprep.subr.mxu0 0.0
        %689 = vmatpush1.msra.mxu0 0.0
        %690 = vmatprep.subr.mxu0 0.0
        %691 = vmatpush1.msra.mxu0 0.0
        %692 = vmatprep.subr.mxu0 0.0
        %693 = vmatpush1.msra.mxu0 0.0
        %694 = vmatprep.subr.mxu0 0.0
        %695 = vmatpush1.msra.mxu0 0.0
        %696 = vmatprep.subr.mxu0 0.0
        %697 = vmatpush1.msra.mxu0 0.0
        %698 = vmatprep.subr.mxu0 0.0
        %699 = vmatpush1.msra.mxu0 0.0
        %700 = vmatprep.subr.mxu0 0.0
        %701 = vmatpush1.msra.mxu0 0.0
        %702 = vmatprep.mubr.f32.mxu0 0.0
        %703 = vmatmul.mubr.f32.gmra.mrb[0].mxu0 %v609
        %v704 = vpop.f32.mrb[0].mxu0
        %v705 = vadd.f32 %v636, %v704
        %v706 = vpop.f32.mrb[0].mxu0
        %707 = vmatprep.mubr.f32.mxu0 0.0
        %708 = vmatmul.mubr.f32.gmra.mrb[0].mxu0 %v610
        %v709 = vpop.f32.mrb[0].mxu0
        %v710 = vadd.f32 %v636, %v709
        %v711 = vpop.f32.mrb[0].mxu0
        %712 = vdwg.mxu0
        %v713 = vmul.f32 %v705, %v611
        %v714 = vmul.f32 %v710, %v612
        %717 = vrot.lane.b32.xlu0 %v613, 16
        %v718 = vpop.permute.xlu0 %717
        %719 = vrot.lane.b32.xlu0 %v614, 16
        %v720 = vpop.permute.xlu0 %719
        %v723 = vmul.f32 %v705, %v718
        %v724 = vmul.f32 %v710, %v720
        %727 = vrot.lane.b32.xlu0 %v723, 112
        %v728 = vpop.permute.xlu0 %727
        %729 = vrot.lane.b32.xlu0 %v724, 112
        %v730 = vpop.permute.xlu0 %729
        %v733 = vsub.f32 %v713, %v728
        %v734 = vsub.f32 %v714, %v730
        %vm735 = vcmask 130048
        %736 = vst.msk [vmem:[%s588] sm:$0xff] %vm735, %v733
        %737 = vst.msk [vmem:[%s588 + $0x8] sm:$0xff] %vm735, %v734
        %740 = vrot.lane.b32.xlu0 %v611, 16
        %v741 = vpop.permute.xlu0 %740
        %742 = vrot.lane.b32.xlu0 %v612, 16
        %v743 = vpop.permute.xlu0 %742
        %v746 = vmul.f32 %v705, %v741
        %v747 = vmul.f32 %v710, %v743
        %v748 = vmul.f32 %v705, %v613
        %v749 = vmul.f32 %v710, %v614
        %752 = vrot.lane.b32.xlu0 %v748, 16
        %v753 = vpop.permute.xlu0 %752
        %754 = vrot.lane.b32.xlu0 %v749, 16
        %v755 = vpop.permute.xlu0 %754
        %v758 = vadd.f32 %v746, %v753
        %v759 = vadd.f32 %v747, %v755
        %vm760 = vcmask 261248
        %761 = vst.msk [vmem:[%s588] sm:$0xff] %vm760, %v758
        %762 = vst.msk [vmem:[%s588 + $0x8] sm:$0xff] %vm760, %v759
        %763 = vrot.lane.b32.xlu0 %v611, 32
        %v764 = vpop.permute.xlu0 %763
        %765 = vrot.lane.b32.xlu0 %v612, 32
        %v766 = vpop.permute.xlu0 %765
        %v769 = vmul.f32 %v705, %v764
        %v770 = vmul.f32 %v710, %v766
        %771 = vrot.lane.b32.xlu0 %v613, 48
        %v772 = vpop.permute.xlu0 %771
        %773 = vrot.lane.b32.xlu0 %v614, 48
        %v774 = vpop.permute.xlu0 %773
        %v777 = vmul.f32 %v705, %v772
        %v778 = vmul.f32 %v710, %v774
        %781 = vrot.lane.b32.xlu0 %v777, 112
        %v782 = vpop.permute.xlu0 %781
        %783 = vrot.lane.b32.xlu0 %v778, 112
        %v784 = vpop.permute.xlu0 %783
        %v787 = vsub.f32 %v769, %v782
        %v788 = vsub.f32 %v770, %v784
        %791 = vrot.lane.b32.xlu0 %v787, 96
        %v792 = vpop.permute.xlu0 %791
        %793 = vrot.lane.b32.xlu0 %v788, 96
        %v794 = vpop.permute.xlu0 %793
        %s797 = scalar_lea.vmem %s588, 16 [#allocation17]
        %798 = vst.msk [vmem:[%s797] sm:$0xff] %vm735, %v792
        %799 = vst.msk [vmem:[%s797 + $0x8] sm:$0xff] %vm735, %v794
        %800 = vrot.lane.b32.xlu0 %v611, 48
        %v801 = vpop.permute.xlu0 %800
        %802 = vrot.lane.b32.xlu0 %v612, 48
        %v803 = vpop.permute.xlu0 %802
        %v806 = vmul.f32 %v705, %v801
        %v807 = vmul.f32 %v710, %v803
        %808 = vrot.lane.b32.xlu0 %v613, 32
        %v809 = vpop.permute.xlu0 %808
        %810 = vrot.lane.b32.xlu0 %v614, 32
        %v811 = vpop.permute.xlu0 %810
        %v814 = vmul.f32 %v705, %v809
        %v815 = vmul.f32 %v710, %v811
        %818 = vrot.lane.b32.xlu0 %v814, 16
        %v819 = vpop.permute.xlu0 %818
        %820 = vrot.lane.b32.xlu0 %v815, 16
        %v821 = vpop.permute.xlu0 %820
        %v824 = vadd.f32 %v806, %v819
        %v825 = vadd.f32 %v807, %v821
        %828 = vrot.lane.b32.xlu0 %v824, 96
        %v829 = vpop.permute.xlu0 %828
        %830 = vrot.lane.b32.xlu0 %v825, 96
        %v831 = vpop.permute.xlu0 %830
        %834 = vst.msk [vmem:[%s797] sm:$0xff] %vm760, %v829
        %835 = vst.msk [vmem:[%s797 + $0x8] sm:$0xff] %vm760, %v831
        %836 = vrot.lane.b32.xlu0 %v611, 64
        %v837 = vpop.permute.xlu0 %836
        %838 = vrot.lane.b32.xlu0 %v612, 64
        %v839 = vpop.permute.xlu0 %838
        %v842 = vmul.f32 %v705, %v837
        %v843 = vmul.f32 %v710, %v839
        %844 = vrot.lane.b32.xlu0 %v613, 80
        %v845 = vpop.permute.xlu0 %844
        %846 = vrot.lane.b32.xlu0 %v614, 80
        %v847 = vpop.permute.xlu0 %846
        %v850 = vmul.f32 %v705, %v845
        %v851 = vmul.f32 %v710, %v847
        %854 = vrot.lane.b32.xlu0 %v850, 112
        %v855 = vpop.permute.xlu0 %854
        %856 = vrot.lane.b32.xlu0 %v851, 112
        %v857 = vpop.permute.xlu0 %856
        %v860 = vsub.f32 %v842, %v855
        %v861 = vsub.f32 %v843, %v857
        %864 = vrot.lane.b32.xlu0 %v860, 64
        %v865 = vpop.permute.xlu0 %864
        %866 = vrot.lane.b32.xlu0 %v861, 64
        %v867 = vpop.permute.xlu0 %866
        %s870 = scalar_lea.vmem %s588, 32 [#allocation17]
        %871 = vst.msk [vmem:[%s870] sm:$0xff] %vm735, %v865
        %872 = vst.msk [vmem:[%s870 + $0x8] sm:$0xff] %vm735, %v867
        %873 = vrot.lane.b32.xlu0 %v611, 80
        %v874 = vpop.permute.xlu0 %873
        %875 = vrot.lane.b32.xlu0 %v612, 80
        %v876 = vpop.permute.xlu0 %875
        %v879 = vmul.f32 %v705, %v874
        %v880 = vmul.f32 %v710, %v876
        %881 = vrot.lane.b32.xlu0 %v613, 64
        %v882 = vpop.permute.xlu0 %881
        %883 = vrot.lane.b32.xlu0 %v614, 64
        %v884 = vpop.permute.xlu0 %883
        %v887 = vmul.f32 %v705, %v882
        %v888 = vmul.f32 %v710, %v884
        %891 = vrot.lane.b32.xlu0 %v887, 16
        %v892 = vpop.permute.xlu0 %891
        %893 = vrot.lane.b32.xlu0 %v888, 16
        %v894 = vpop.permute.xlu0 %893
        %v897 = vadd.f32 %v879, %v892
        %v898 = vadd.f32 %v880, %v894
        %901 = vrot.lane.b32.xlu0 %v897, 64
        %v902 = vpop.permute.xlu0 %901
        %903 = vrot.lane.b32.xlu0 %v898, 64
        %v904 = vpop.permute.xlu0 %903
        %907 = vst.msk [vmem:[%s870] sm:$0xff] %vm760, %v902
        %908 = vst.msk [vmem:[%s870 + $0x8] sm:$0xff] %vm760, %v904
        %909 = vrot.lane.b32.xlu0 %v611, 96
        %v910 = vpop.permute.xlu0 %909
        %911 = vrot.lane.b32.xlu0 %v612, 96
        %v912 = vpop.permute.xlu0 %911
        %v915 = vmul.f32 %v705, %v910
        %v916 = vmul.f32 %v710, %v912
        %917 = vrot.lane.b32.xlu0 %v613, 112
        %v918 = vpop.permute.xlu0 %917
        %919 = vrot.lane.b32.xlu0 %v614, 112
        %v920 = vpop.permute.xlu0 %919
        %v923 = vmul.f32 %v705, %v918
        %v924 = vmul.f32 %v710, %v920
        %927 = vrot.lane.b32.xlu0 %v923, 112
        %v928 = vpop.permute.xlu0 %927
        %929 = vrot.lane.b32.xlu0 %v924, 112
        %v930 = vpop.permute.xlu0 %929
        %v933 = vsub.f32 %v915, %v928
        %v934 = vsub.f32 %v916, %v930
        %937 = vrot.lane.b32.xlu0 %v933, 32
        %v938 = vpop.permute.xlu0 %937
        %939 = vrot.lane.b32.xlu0 %v934, 32
        %v940 = vpop.permute.xlu0 %939
        %s943 = scalar_lea.vmem %s588, 48 [#allocation17]
        %944 = vst.msk [vmem:[%s943] sm:$0xff] %vm735, %v938
        %945 = vst.msk [vmem:[%s943 + $0x8] sm:$0xff] %vm735, %v940
        %946 = vrot.lane.b32.xlu0 %v611, 112
        %v947 = vpop.permute.xlu0 %946
        %948 = vrot.lane.b32.xlu0 %v612, 112
        %v949 = vpop.permute.xlu0 %948
        %v952 = vmul.f32 %v705, %v947
        %v953 = vmul.f32 %v710, %v949
        %954 = vrot.lane.b32.xlu0 %v613, 96
        %v955 = vpop.permute.xlu0 %954
        %956 = vrot.lane.b32.xlu0 %v614, 96
        %v957 = vpop.permute.xlu0 %956
        %v960 = vmul.f32 %v705, %v955
        %v961 = vmul.f32 %v710, %v957
        %964 = vrot.lane.b32.xlu0 %v960, 16
        %v965 = vpop.permute.xlu0 %964
        %966 = vrot.lane.b32.xlu0 %v961, 16
        %v967 = vpop.permute.xlu0 %966
        %v970 = vadd.f32 %v952, %v965
        %v971 = vadd.f32 %v953, %v967
        %974 = vrot.lane.b32.xlu0 %v970, 32
        %v975 = vpop.permute.xlu0 %974
        %976 = vrot.lane.b32.xlu0 %v971, 32
        %v977 = vpop.permute.xlu0 %976
        %980 = vst.msk [vmem:[%s943] sm:$0xff] %vm760, %v975
        %981 = vst.msk [vmem:[%s943 + $0x8] sm:$0xff] %vm760, %v977
        %v982 = vld [vmem:[#allocation7] sm:$0xff]
        %v983 = vld [vmem:[#allocation7 + $0x8] sm:$0xff]
        %v984 = vld [vmem:[#allocation7 + $0x10] sm:$0xff]
        %v985 = vld [vmem:[#allocation7 + $0x18] sm:$0xff]
        %v986 = vld [vmem:[#allocation7 + $0x20] sm:$0xff]
        %v987 = vld [vmem:[#allocation7 + $0x28] sm:$0xff]
        %v988 = vld [vmem:[#allocation7 + $0x30] sm:$0xff]
        %v989 = vld [vmem:[#allocation7 + $0x38] sm:$0xff]
        %v990 = vld [vmem:[#allocation7 + $0x40] sm:$0xff]
        %v991 = vld [vmem:[#allocation7 + $0x48] sm:$0xff]
        %v992 = vld [vmem:[#allocation7 + $0x50] sm:$0xff]
        %v993 = vld [vmem:[#allocation7 + $0x58] sm:$0xff]
        %v994 = vld [vmem:[#allocation7 + $0x60] sm:$0xff]
        %v995 = vld [vmem:[#allocation7 + $0x68] sm:$0xff]
        %v996 = vld [vmem:[#allocation7 + $0x70] sm:$0xff]
        %v997 = vld [vmem:[#allocation7 + $0x78] sm:$0xff]
        %v998 = vld [vmem:[#allocation11] sm:$0x1]
        %v1000 = vlaneseq
        %v1001 = vshrl.u32 %v1000, 7
        %v1002 = vsub.s32 0, %v1001
        %v1003 = vrot.slane %v998, %v1002
        %1005 = vmatprep.subr.mxu0 0.0
        %1006 = vmatpush1.msra.mxu0 %v982
        %1007 = vmatprep.subr.mxu0 0.0
        %1008 = vmatpush1.msra.mxu0 %v983
        %1009 = vmatprep.subr.mxu0 0.0
        %1010 = vmatpush1.msra.mxu0 %v984
        %1011 = vmatprep.subr.mxu0 0.0
        %1012 = vmatpush1.msra.mxu0 %v985
        %1013 = vmatprep.subr.mxu0 0.0
        %1014 = vmatpush1.msra.mxu0 %v986
        %1015 = vmatprep.subr.mxu0 0.0
        %1016 = vmatpush1.msra.mxu0 %v987
        %1017 = vmatprep.subr.mxu0 0.0
        %1018 = vmatpush1.msra.mxu0 %v988
        %1019 = vmatprep.subr.mxu0 0.0
        %1020 = vmatpush1.msra.mxu0 %v989
        %1021 = vmatprep.subr.mxu0 0.0
        %1022 = vmatpush1.msra.mxu0 %v990
        %1023 = vmatprep.subr.mxu0 0.0
        %1024 = vmatpush1.msra.mxu0 %v991
        %1025 = vmatprep.subr.mxu0 0.0
        %1026 = vmatpush1.msra.mxu0 %v992
        %1027 = vmatprep.subr.mxu0 0.0
        %1028 = vmatpush1.msra.mxu0 %v993
        %1029 = vmatprep.subr.mxu0 0.0
        %1030 = vmatpush1.msra.mxu0 %v994
        %1031 = vmatprep.subr.mxu0 0.0
        %1032 = vmatpush1.msra.mxu0 %v995
        %1033 = vmatprep.subr.mxu0 0.0
        %1034 = vmatpush1.msra.mxu0 %v996
        %1035 = vmatprep.subr.mxu0 0.0
        %1036 = vmatpush1.msra.mxu0 %v997
        %1037 = vmatprep.subr.mxu0 0.0
        %1038 = vmatpush1.msra.mxu0 0.0
        %1039 = vmatprep.subr.mxu0 0.0
        %1040 = vmatpush1.msra.mxu0 0.0
        %1041 = vmatprep.subr.mxu0 0.0
        %1042 = vmatpush1.msra.mxu0 0.0
        %1043 = vmatprep.subr.mxu0 0.0
        %1044 = vmatpush1.msra.mxu0 0.0
        %1045 = vmatprep.subr.mxu0 0.0
        %1046 = vmatpush1.msra.mxu0 0.0
        %1047 = vmatprep.subr.mxu0 0.0
        %1048 = vmatpush1.msra.mxu0 0.0
        %1049 = vmatprep.subr.mxu0 0.0
        %1050 = vmatpush1.msra.mxu0 0.0
        %1051 = vmatprep.subr.mxu0 0.0
        %1052 = vmatpush1.msra.mxu0 0.0
        %1053 = vmatprep.subr.mxu0 0.0
        %1054 = vmatpush1.msra.mxu0 0.0
        %1055 = vmatprep.subr.mxu0 0.0
        %1056 = vmatpush1.msra.mxu0 0.0
        %1057 = vmatprep.subr.mxu0 0.0
        %1058 = vmatpush1.msra.mxu0 0.0
        %1059 = vmatprep.subr.mxu0 0.0
        %1060 = vmatpush1.msra.mxu0 0.0
        %1061 = vmatprep.subr.mxu0 0.0
        %1062 = vmatpush1.msra.mxu0 0.0
        %1063 = vmatprep.subr.mxu0 0.0
        %1064 = vmatpush1.msra.mxu0 0.0
        %1065 = vmatprep.subr.mxu0 0.0
        %1066 = vmatpush1.msra.mxu0 0.0
        %1067 = vmatprep.subr.mxu0 0.0
        %1068 = vmatpush1.msra.mxu0 0.0
        %1069 = vmatprep.mubr.f32.mxu0 0.0
        %1070 = vmatmul.mubr.f32.gmra.mrb[0].mxu0 %v609
        %v1071 = vpop.f32.mrb[0].mxu0
        %v1072 = vadd.f32 %v1003, %v1071
        %v1073 = vpop.f32.mrb[0].mxu0
        %1074 = vmatprep.mubr.f32.mxu0 0.0
        %1075 = vmatmul.mubr.f32.gmra.mrb[0].mxu0 %v610
        %v1076 = vpop.f32.mrb[0].mxu0
        %v1077 = vadd.f32 %v1003, %v1076
        %v1078 = vpop.f32.mrb[0].mxu0
        %1079 = vdwg.mxu0
        %v1080 = vmul.f32 %v1072, %v611
        %v1081 = vmul.f32 %v1077, %v612
        %v1082 = vmul.f32 %v1072, %v718
        %v1083 = vmul.f32 %v1077, %v720
        %1086 = vrot.lane.b32.xlu0 %v1082, 112
        %v1087 = vpop.permute.xlu0 %1086
        %1088 = vrot.lane.b32.xlu0 %v1083, 112
        %v1089 = vpop.permute.xlu0 %1088
        %v1092 = vsub.f32 %v1080, %v1087
        %v1093 = vsub.f32 %v1081, %v1089
        %1094 = vst.msk [vmem:[%s595] sm:$0xff] %vm735, %v1092
        %1095 = vst.msk [vmem:[%s595 + $0x8] sm:$0xff] %vm735, %v1093
        %v1096 = vmul.f32 %v1072, %v741
        %v1097 = vmul.f32 %v1077, %v743
        %v1098 = vmul.f32 %v1072, %v613
        %v1099 = vmul.f32 %v1077, %v614
        %1102 = vrot.lane.b32.xlu0 %v1098, 16
        %v1103 = vpop.permute.xlu0 %1102
        %1104 = vrot.lane.b32.xlu0 %v1099, 16
        %v1105 = vpop.permute.xlu0 %1104
        %v1108 = vadd.f32 %v1096, %v1103
        %v1109 = vadd.f32 %v1097, %v1105
        %1110 = vst.msk [vmem:[%s595] sm:$0xff] %vm760, %v1108
        %1111 = vst.msk [vmem:[%s595 + $0x8] sm:$0xff] %vm760, %v1109
        %v1112 = vmul.f32 %v1072, %v764
        %v1113 = vmul.f32 %v1077, %v766
        %v1114 = vmul.f32 %v1072, %v772
        %v1115 = vmul.f32 %v1077, %v774
        %1118 = vrot.lane.b32.xlu0 %v1114, 112
        %v1119 = vpop.permute.xlu0 %1118
        %1120 = vrot.lane.b32.xlu0 %v1115, 112
        %v1121 = vpop.permute.xlu0 %1120
        %v1124 = vsub.f32 %v1112, %v1119
        %v1125 = vsub.f32 %v1113, %v1121
        %1128 = vrot.lane.b32.xlu0 %v1124, 96
        %v1129 = vpop.permute.xlu0 %1128
        %1130 = vrot.lane.b32.xlu0 %v1125, 96
        %v1131 = vpop.permute.xlu0 %1130
        %s1134 = scalar_lea.vmem %s595, 16 [#allocation18]
        %1135 = vst.msk [vmem:[%s1134] sm:$0xff] %vm735, %v1129
        %1136 = vst.msk [vmem:[%s1134 + $0x8] sm:$0xff] %vm735, %v1131
        %v1137 = vmul.f32 %v1072, %v801
        %v1138 = vmul.f32 %v1077, %v803
        %v1139 = vmul.f32 %v1072, %v809
        %v1140 = vmul.f32 %v1077, %v811
        %1143 = vrot.lane.b32.xlu0 %v1139, 16
        %v1144 = vpop.permute.xlu0 %1143
        %1145 = vrot.lane.b32.xlu0 %v1140, 16
        %v1146 = vpop.permute.xlu0 %1145
        %v1149 = vadd.f32 %v1137, %v1144
        %v1150 = vadd.f32 %v1138, %v1146
        %1153 = vrot.lane.b32.xlu0 %v1149, 96
        %v1154 = vpop.permute.xlu0 %1153
        %1155 = vrot.lane.b32.xlu0 %v1150, 96
        %v1156 = vpop.permute.xlu0 %1155
        %1159 = vst.msk [vmem:[%s1134] sm:$0xff] %vm760, %v1154
        %1160 = vst.msk [vmem:[%s1134 + $0x8] sm:$0xff] %vm760, %v1156
        %v1161 = vmul.f32 %v1072, %v837
        %v1162 = vmul.f32 %v1077, %v839
        %v1163 = vmul.f32 %v1072, %v845
        %v1164 = vmul.f32 %v1077, %v847
        %1167 = vrot.lane.b32.xlu0 %v1163, 112
        %v1168 = vpop.permute.xlu0 %1167
        %1169 = vrot.lane.b32.xlu0 %v1164, 112
        %v1170 = vpop.permute.xlu0 %1169
        %v1173 = vsub.f32 %v1161, %v1168
        %v1174 = vsub.f32 %v1162, %v1170
        %1177 = vrot.lane.b32.xlu0 %v1173, 64
        %v1178 = vpop.permute.xlu0 %1177
        %1179 = vrot.lane.b32.xlu0 %v1174, 64
        %v1180 = vpop.permute.xlu0 %1179
        %s1183 = scalar_lea.vmem %s595, 32 [#allocation18]
        %1184 = vst.msk [vmem:[%s1183] sm:$0xff] %vm735, %v1178
        %1185 = vst.msk [vmem:[%s1183 + $0x8] sm:$0xff] %vm735, %v1180
        %v1186 = vmul.f32 %v1072, %v874
        %v1187 = vmul.f32 %v1077, %v876
        %v1188 = vmul.f32 %v1072, %v882
        %v1189 = vmul.f32 %v1077, %v884
        %1192 = vrot.lane.b32.xlu0 %v1188, 16
        %v1193 = vpop.permute.xlu0 %1192
        %1194 = vrot.lane.b32.xlu0 %v1189, 16
        %v1195 = vpop.permute.xlu0 %1194
        %v1198 = vadd.f32 %v1186, %v1193
        %v1199 = vadd.f32 %v1187, %v1195
        %1202 = vrot.lane.b32.xlu0 %v1198, 64
        %v1203 = vpop.permute.xlu0 %1202
        %1204 = vrot.lane.b32.xlu0 %v1199, 64
        %v1205 = vpop.permute.xlu0 %1204
        %1208 = vst.msk [vmem:[%s1183] sm:$0xff] %vm760, %v1203
        %1209 = vst.msk [vmem:[%s1183 + $0x8] sm:$0xff] %vm760, %v1205
        %v1210 = vmul.f32 %v1072, %v910
        %v1211 = vmul.f32 %v1077, %v912
        %v1212 = vmul.f32 %v1072, %v918
        %v1213 = vmul.f32 %v1077, %v920
        %1216 = vrot.lane.b32.xlu0 %v1212, 112
        %v1217 = vpop.permute.xlu0 %1216
        %1218 = vrot.lane.b32.xlu0 %v1213, 112
        %v1219 = vpop.permute.xlu0 %1218
        %v1222 = vsub.f32 %v1210, %v1217
        %v1223 = vsub.f32 %v1211, %v1219
        %1226 = vrot.lane.b32.xlu0 %v1222, 32
        %v1227 = vpop.permute.xlu0 %1226
        %1228 = vrot.lane.b32.xlu0 %v1223, 32
        %v1229 = vpop.permute.xlu0 %1228
        %s1232 = scalar_lea.vmem %s595, 48 [#allocation18]
        %1233 = vst.msk [vmem:[%s1232] sm:$0xff] %vm735, %v1227
        %1234 = vst.msk [vmem:[%s1232 + $0x8] sm:$0xff] %vm735, %v1229
        %v1235 = vmul.f32 %v1072, %v947
        %v1236 = vmul.f32 %v1077, %v949
        %v1237 = vmul.f32 %v1072, %v955
        %v1238 = vmul.f32 %v1077, %v957
        %1241 = vrot.lane.b32.xlu0 %v1237, 16
        %v1242 = vpop.permute.xlu0 %1241
        %1243 = vrot.lane.b32.xlu0 %v1238, 16
        %v1244 = vpop.permute.xlu0 %1243
        %v1247 = vadd.f32 %v1235, %v1242
        %v1248 = vadd.f32 %v1236, %v1244
        %1251 = vrot.lane.b32.xlu0 %v1247, 32
        %v1252 = vpop.permute.xlu0 %1251
        %1253 = vrot.lane.b32.xlu0 %v1248, 32
        %v1254 = vpop.permute.xlu0 %1253
        %1257 = vst.msk [vmem:[%s1232] sm:$0xff] %vm760, %v1252
        %1258 = vst.msk [vmem:[%s1232 + $0x8] sm:$0xff] %vm760, %v1254
        %v1259 = vld [vmem:[#allocation8] sm:$0xff]
        %v1260 = vld [vmem:[#allocation8 + $0x8] sm:$0xff]
        %v1261 = vld [vmem:[#allocation8 + $0x10] sm:$0xff]
        %v1262 = vld [vmem:[#allocation8 + $0x18] sm:$0xff]
        %v1263 = vld [vmem:[#allocation8 + $0x20] sm:$0xff]
        %v1264 = vld [vmem:[#allocation8 + $0x28] sm:$0xff]
        %v1265 = vld [vmem:[#allocation8 + $0x30] sm:$0xff]
        %v1266 = vld [vmem:[#allocation8 + $0x38] sm:$0xff]
        %v1267 = vld [vmem:[#allocation8 + $0x40] sm:$0xff]
        %v1268 = vld [vmem:[#allocation8 + $0x48] sm:$0xff]
        %v1269 = vld [vmem:[#allocation8 + $0x50] sm:$0xff]
        %v1270 = vld [vmem:[#allocation8 + $0x58] sm:$0xff]
        %v1271 = vld [vmem:[#allocation8 + $0x60] sm:$0xff]
        %v1272 = vld [vmem:[#allocation8 + $0x68] sm:$0xff]
        %v1273 = vld [vmem:[#allocation8 + $0x70] sm:$0xff]
        %v1274 = vld [vmem:[#allocation8 + $0x78] sm:$0xff]
        %v1275 = vld [vmem:[#allocation13] sm:$0x1]
        %v1277 = vlaneseq
        %v1278 = vshrl.u32 %v1277, 7
        %v1279 = vsub.s32 0, %v1278
        %v1280 = vrot.slane %v1275, %v1279
        %1282 = vmatprep.subr.mxu0 0.0
        %1283 = vmatpush1.msra.mxu0 %v1259
        %1284 = vmatprep.subr.mxu0 0.0
        %1285 = vmatpush1.msra.mxu0 %v1260
        %1286 = vmatprep.subr.mxu0 0.0
        %1287 = vmatpush1.msra.mxu0 %v1261
        %1288 = vmatprep.subr.mxu0 0.0
        %1289 = vmatpush1.msra.mxu0 %v1262
        %1290 = vmatprep.subr.mxu0 0.0
        %1291 = vmatpush1.msra.mxu0 %v1263
        %1292 = vmatprep.subr.mxu0 0.0
        %1293 = vmatpush1.msra.mxu0 %v1264
        %1294 = vmatprep.subr.mxu0 0.0
        %1295 = vmatpush1.msra.mxu0 %v1265
        %1296 = vmatprep.subr.mxu0 0.0
        %1297 = vmatpush1.msra.mxu0 %v1266
        %1298 = vmatprep.subr.mxu0 0.0
        %1299 = vmatpush1.msra.mxu0 %v1267
        %1300 = vmatprep.subr.mxu0 0.0
        %1301 = vmatpush1.msra.mxu0 %v1268
        %1302 = vmatprep.subr.mxu0 0.0
        %1303 = vmatpush1.msra.mxu0 %v1269
        %1304 = vmatprep.subr.mxu0 0.0
        %1305 = vmatpush1.msra.mxu0 %v1270
        %1306 = vmatprep.subr.mxu0 0.0
        %1307 = vmatpush1.msra.mxu0 %v1271
        %1308 = vmatprep.subr.mxu0 0.0
        %1309 = vmatpush1.msra.mxu0 %v1272
        %1310 = vmatprep.subr.mxu0 0.0
        %1311 = vmatpush1.msra.mxu0 %v1273
        %1312 = vmatprep.subr.mxu0 0.0
        %1313 = vmatpush1.msra.mxu0 %v1274
        %1314 = vmatprep.subr.mxu0 0.0
        %1315 = vmatpush1.msra.mxu0 0.0
        %1316 = vmatprep.subr.mxu0 0.0
        %1317 = vmatpush1.msra.mxu0 0.0
        %1318 = vmatprep.subr.mxu0 0.0
        %1319 = vmatpush1.msra.mxu0 0.0
        %1320 = vmatprep.subr.mxu0 0.0
        %1321 = vmatpush1.msra.mxu0 0.0
        %1322 = vmatprep.subr.mxu0 0.0
        %1323 = vmatpush1.msra.mxu0 0.0
        %1324 = vmatprep.subr.mxu0 0.0
        %1325 = vmatpush1.msra.mxu0 0.0
        %1326 = vmatprep.subr.mxu0 0.0
        %1327 = vmatpush1.msra.mxu0 0.0
        %1328 = vmatprep.subr.mxu0 0.0
        %1329 = vmatpush1.msra.mxu0 0.0
        %1330 = vmatprep.subr.mxu0 0.0
        %1331 = vmatpush1.msra.mxu0 0.0
        %1332 = vmatprep.subr.mxu0 0.0
        %1333 = vmatpush1.msra.mxu0 0.0
        %1334 = vmatprep.subr.mxu0 0.0
        %1335 = vmatpush1.msra.mxu0 0.0
        %1336 = vmatprep.subr.mxu0 0.0
        %1337 = vmatpush1.msra.mxu0 0.0
        %1338 = vmatprep.subr.mxu0 0.0
        %1339 = vmatpush1.msra.mxu0 0.0
        %1340 = vmatprep.subr.mxu0 0.0
        %1341 = vmatpush1.msra.mxu0 0.0
        %1342 = vmatprep.subr.mxu0 0.0
        %1343 = vmatpush1.msra.mxu0 0.0
        %1344 = vmatprep.subr.mxu0 0.0
        %1345 = vmatpush1.msra.mxu0 0.0
        %1346 = vmatprep.mubr.f32.mxu0 0.0
        %1347 = vmatmul.mubr.f32.gmra.mrb[0].mxu0 %v609
        %v1348 = vpop.f32.mrb[0].mxu0
        %v1349 = vadd.f32 %v1280, %v1348
        %v1350 = vpop.f32.mrb[0].mxu0
        %1351 = vmatprep.mubr.f32.mxu0 0.0
        %1352 = vmatmul.mubr.f32.gmra.mrb[0].mxu0 %v610
        %v1353 = vpop.f32.mrb[0].mxu0
        %v1354 = vadd.f32 %v1280, %v1353
        %v1355 = vpop.f32.mrb[0].mxu0
        %1356 = vdwg.mxu0
        %vm1357 = vcmask 261120
        %1358 = vst.msk [vmem:[%s602] sm:$0xff] %vm1357, %v1349
        %1359 = vst.msk [vmem:[%s602 + $0x8] sm:$0xff] %vm1357, %v1354
        %1362 = vrot.lane.b32.xlu0 %v1349, 96
        %v1363 = vpop.permute.xlu0 %1362
        %1364 = vrot.lane.b32.xlu0 %v1354, 96
        %v1365 = vpop.permute.xlu0 %1364
        %s1368 = scalar_lea.vmem %s602, 16 [#allocation20]
        %1369 = vst.msk [vmem:[%s1368] sm:$0xff] %vm1357, %v1363
        %1370 = vst.msk [vmem:[%s1368 + $0x8] sm:$0xff] %vm1357, %v1365
        %1371 = vrot.lane.b32.xlu0 %v1349, 64
        %v1372 = vpop.permute.xlu0 %1371
        %1373 = vrot.lane.b32.xlu0 %v1354, 64
        %v1374 = vpop.permute.xlu0 %1373
        %s1377 = scalar_lea.vmem %s602, 32 [#allocation20]
        %1378 = vst.msk [vmem:[%s1377] sm:$0xff] %vm1357, %v1372
        %1379 = vst.msk [vmem:[%s1377 + $0x8] sm:$0xff] %vm1357, %v1374
        %1380 = vrot.lane.b32.xlu0 %v1349, 32
        %v1381 = vpop.permute.xlu0 %1380
        %1382 = vrot.lane.b32.xlu0 %v1354, 32
        %v1383 = vpop.permute.xlu0 %1382
        %s1386 = scalar_lea.vmem %s602, 48 [#allocation20]
        %1387 = vst.msk [vmem:[%s1386] sm:$0xff] %vm1357, %v1381
        %1388 = vst.msk [vmem:[%s1386 + $0x8] sm:$0xff] %vm1357, %v1383
        %s1389 = sand.u32 %s266, 1
        %s1390 = scalar_lea.sflag [#allocation4], %s1389
        %s1391 = sand.u32 %s266, 1
        %s1392 = smul.addr %s1391, 64
        %s1393 = scalar_lea.vmem [#allocation17], %s1392
        %s1394 = sand.u32 %s38, 1
        %s1395 = scalar_lea.sflag [#allocation19], %s1394
        %s1396 = sand.u32 %s294, 1
        %s1397 = smul.addr %s1396, 64
        %s1398 = scalar_lea.vmem [#allocation18], %s1397
        %s1399 = sand.u32 %s38, 1
        %s1400 = scalar_lea.sflag [#allocation19], %s1399
        %s1401 = sand.u32 %s322, 1
        %s1402 = smul.addr %s1401, 64
        %s1403 = scalar_lea.vmem [#allocation20], %s1402
        // Predicated region
        $region93: #{tpu_custom_call.1} parent=55 // pred_check
          %p1404 = pneg %p276
        $region94: #{tpu_custom_call.1} parent=55 // pred_check_branch
          %1406 = sbr.rel (%p1404) target = $region96
        $region95: #{tpu_custom_call.1} parent=55 // pred_region
          #allocation22 [shape = 'u32[6]{0}', space=smem, size = 0x18, scoped, tag = 'DMA stride descriptor']
          %s1407 = smul.u32 2, %s43
          %s1409 = ssub.s32 1024, 1024
          %1410 = vsyncadd %s1390, %s1409
          %s1411 = smul.addr %s42, 16
          %s1412 = sadd.s32 %s1407, %s1411
          %s1413 = smul.addr %s1412, 128
          %s1414 = scalar_lea.hbm %s9, %s1413
          %s1416 = sshll.u32 1, 14
          %s1417 = sxor.u32 4294967295, %s1416
          %s1420 = sshll.u32 7, 18
          %s1421 = sxor.u32 4294967295, %s1420
          %s1422 = sand.u32 0, %s1421
          %s1424 = sor.u32 %s1422, 0
          %s1426 = sshll.u32 3, 24
          %s1427 = sxor.u32 4294967295, %s1426
          %s1428 = sand.u32 %s1424, %s1427
          %s1430 = sor.u32 %s1428, 0
          %s1431 = sshll.u32 %s1393, 4
          %s1432 = int_to_ptr.vmem [resolvable:$true] %s1431
          %1438 = sst [smem:[#allocation22]] 256
          %s1439 = scalar_lea.smem [#allocation22], 1
          %1440 = sst [smem:[%s1439]] 512
          %s1441 = scalar_lea.smem [#allocation22], 2
          %1442 = sst [smem:[%s1441]] 2
          %s1443 = scalar_lea.smem [#allocation22], 3
          %1444 = sst [smem:[%s1443]] 128
          %s1445 = scalar_lea.smem [#allocation22], 4
          %1446 = sst [smem:[%s1445]] 128
          %s1447 = scalar_lea.smem [#allocation22], 5
          %1448 = sst [smem:[%s1447]] 8
          %1450 = dma.general %s1432, 1024, %s1414, %s1390, [#allocation21], [#allocation22], %s1430, 0
        $region96: #{tpu_custom_call.1} parent=55 // pred_fallthru
          _
        // Predicated region
        $region97: #{tpu_custom_call.1} parent=55 // pred_check
          %p1451 = pneg %p304
        $region98: #{tpu_custom_call.1} parent=55 // pred_check_branch
          %1453 = sbr.rel (%p1451) target = $region100
        $region99: #{tpu_custom_call.1} parent=55 // pred_region
          #allocation24 [shape = 'u32[6]{0}', space=smem, size = 0x18, scoped, tag = 'DMA stride descriptor']
          %s1454 = smul.u32 2, %s43
          %s1456 = ssub.s32 1024, 1024
          %1457 = vsyncadd %s1395, %s1456
          %s1458 = smul.addr %s42, 16
          %s1459 = sadd.s32 %s1454, %s1458
          %s1460 = smul.addr %s1459, 128
          %s1461 = scalar_lea.hbm %s10, %s1460
          %s1463 = sshll.u32 1, 14
          %s1464 = sxor.u32 4294967295, %s1463
          %s1467 = sshll.u32 7, 18
          %s1468 = sxor.u32 4294967295, %s1467
          %s1469 = sand.u32 0, %s1468
          %s1471 = sor.u32 %s1469, 0
          %s1473 = sshll.u32 3, 24
          %s1474 = sxor.u32 4294967295, %s1473
          %s1475 = sand.u32 %s1471, %s1474
          %s1477 = sor.u32 %s1475, 0
          %s1478 = sshll.u32 %s1398, 4
          %s1479 = int_to_ptr.vmem [resolvable:$true] %s1478
          %1485 = sst [smem:[#allocation24]] 256
          %s1486 = scalar_lea.smem [#allocation24], 1
          %1487 = sst [smem:[%s1486]] 512
          %s1488 = scalar_lea.smem [#allocation24], 2
          %1489 = sst [smem:[%s1488]] 2
          %s1490 = scalar_lea.smem [#allocation24], 3
          %1491 = sst [smem:[%s1490]] 128
          %s1492 = scalar_lea.smem [#allocation24], 4
          %1493 = sst [smem:[%s1492]] 128
          %s1494 = scalar_lea.smem [#allocation24], 5
          %1495 = sst [smem:[%s1494]] 8
          %1497 = dma.general %s1479, 1024, %s1461, %s1395, [#allocation23], [#allocation24], %s1477, 0
        $region100: #{tpu_custom_call.1} parent=55 // pred_fallthru
          _
        // Predicated region
        $region101: #{tpu_custom_call.1} parent=55 // pred_check
          %p1498 = pneg %p332
        $region102: #{tpu_custom_call.1} parent=55 // pred_check_branch
          %1500 = sbr.rel (%p1498) target = $region104
        $region103: #{tpu_custom_call.1} parent=55 // pred_region
          #allocation26 [shape = 'u32[6]{0}', space=smem, size = 0x18, scoped, tag = 'DMA stride descriptor']
          %s1501 = smul.u32 2, %s43
          %s1503 = ssub.s32 1024, 1024
          %1504 = vsyncadd %s1400, %s1503
          %s1505 = smul.addr %s42, 16
          %s1506 = sadd.s32 %s1501, %s1505
          %s1507 = smul.addr %s1506, 128
          %s1508 = scalar_lea.hbm %s11, %s1507
          %s1510 = sshll.u32 1, 14
          %s1511 = sxor.u32 4294967295, %s1510
          %s1514 = sshll.u32 7, 18
          %s1515 = sxor.u32 4294967295, %s1514
          %s1516 = sand.u32 0, %s1515
          %s1518 = sor.u32 %s1516, 0
          %s1520 = sshll.u32 3, 24
          %s1521 = sxor.u32 4294967295, %s1520
          %s1522 = sand.u32 %s1518, %s1521
          %s1524 = sor.u32 %s1522, 0
          %s1525 = sshll.u32 %s1403, 4
          %s1526 = int_to_ptr.vmem [resolvable:$true] %s1525
          %1532 = sst [smem:[#allocation26]] 256
          %s1533 = scalar_lea.smem [#allocation26], 1
          %1534 = sst [smem:[%s1533]] 512
          %s1535 = scalar_lea.smem [#allocation26], 2
          %1536 = sst [smem:[%s1535]] 2
          %s1537 = scalar_lea.smem [#allocation26], 3
          %1538 = sst [smem:[%s1537]] 128
          %s1539 = scalar_lea.smem [#allocation26], 4
          %1540 = sst [smem:[%s1539]] 128
          %s1541 = scalar_lea.smem [#allocation26], 5
          %1542 = sst [smem:[%s1541]] 8
          %1544 = dma.general %s1526, 1024, %s1508, %s1400, [#allocation25], [#allocation26], %s1524, 0
        $region104: #{tpu_custom_call.1} parent=55 // pred_fallthru
          _
      $region56: #{tpu_custom_call.1} parent=5 // pred_fallthru
        _
      %p1545 = scmp.le.s32.totalorder 2, %s33
      // Predicated region
      $region105: #{tpu_custom_call.1} parent=5 // pred_check
        %p1546 = pneg %p1545
      $region106: #{tpu_custom_call.1} parent=5 // pred_check_branch
        %1548 = sbr.rel (%p1546) target = $region108
      $region107: #{tpu_custom_call.1} parent=5 // pred_region
        %s1549 = ssub.s32 %s33, 2
        // Predicated region
        $region109: #{tpu_custom_call.1} parent=107 // pred_check
          %p1550 = pneg %p282
        $region110: #{tpu_custom_call.1} parent=107 // pred_check_branch
          %1552 = sbr.rel (%p1550) target = $region112
        $region111: #{tpu_custom_call.1} parent=107 // pred_region
          %s1553 = sand.u32 %s267, 1
          %s1554 = scalar_lea.sflag [#allocation4], %s1553
          %s1555 = sand.u32 %s267, 1
          %s1556 = smul.addr %s1555, 64
          %s1557 = scalar_lea.vmem [#allocation17], %s1556
          %1558 = dma.done %s1554, 1024
        $region112: #{tpu_custom_call.1} parent=107 // pred_fallthru
          _
        // Predicated region
        $region113: #{tpu_custom_call.1} parent=107 // pred_check
          %p1559 = pneg %p310
        $region114: #{tpu_custom_call.1} parent=107 // pred_check_branch
          %1561 = sbr.rel (%p1559) target = $region116
        $region115: #{tpu_custom_call.1} parent=107 // pred_region
          %s1562 = sand.u32 %s39, 1
          %s1563 = scalar_lea.sflag [#allocation19], %s1562
          %s1564 = sand.u32 %s295, 1
          %s1565 = smul.addr %s1564, 64
          %s1566 = scalar_lea.vmem [#allocation18], %s1565
          %1567 = dma.done %s1563, 1024
        $region116: #{tpu_custom_call.1} parent=107 // pred_fallthru
          _
        // Predicated region
        $region117: #{tpu_custom_call.1} parent=107 // pred_check
          %p1568 = pneg %p338
        $region118: #{tpu_custom_call.1} parent=107 // pred_check_branch
          %1570 = sbr.rel (%p1568) target = $region120
        $region119: #{tpu_custom_call.1} parent=107 // pred_region
          %s1571 = sand.u32 %s39, 1
          %s1572 = scalar_lea.sflag [#allocation19], %s1571
          %s1573 = sand.u32 %s323, 1
          %s1574 = smul.addr %s1573, 64
          %s1575 = scalar_lea.vmem [#allocation20], %s1574
          %1576 = dma.done %s1572, 1024
        $region120: #{tpu_custom_call.1} parent=107 // pred_fallthru
          _
      $region108: #{tpu_custom_call.1} parent=5 // pred_fallthru
        _
    $region6: #{tpu_custom_call.1} parent=1 // loop_footer
      %s37 = sadd.s32 1, %s33
    $region7: #{tpu_custom_call.1} parent=1 // loop_footer_branch
      %32 = sbr.rel target = $region3
    $region8: #{tpu_custom_call.1} parent=1 // loop_exit
      _
    %1577 = vsyncpa [#allocation3], 1
    %s1578 = scalar_lea.sflag [#allocation3], 1
    %1579 = vsyncpa %s1578, 1
    %1580 = vsyncpa [#allocation6], 1
    %1581 = vsyncpa [#allocation9], 1
    %1582 = vsyncpa [#allocation12], 1
    %1583 = vsyncpa [#allocation15], 1
    %s1584 = scalar_lea.sflag [#allocation15], 1
    %1585 = vsyncpa %s1584, 1
    %1586 = vsyncpa [#allocation4], 1
    %s1587 = scalar_lea.sflag [#allocation4], 1
    %1588 = vsyncpa %s1587, 1
    %1589 = vsyncpa [#allocation19], 1
    %s1590 = scalar_lea.sflag [#allocation19], 1
    %1591 = vsyncpa %s1590, 1

</llo_original>
